<compile_context>
chip_gen: v7x
topology: tpu7x:2x2x1
jax: 0.10.0
libtpu: 0.0.40
codegen_flags: <defaults>
</compile_context>

<pallas_src>
import functools

import jax
import jax.numpy as jnp
from jax import lax
from jax.experimental import pallas as pl
from jax.experimental.pallas import tpu as pltpu

PAD = 128  # lane-dense padded width (weight tiles, raw-feature cols, output)


# ----------------------------------------------------------------------------
# Fused Pallas kernel: entire GNN forward for ONE graph (one grid step)
# ----------------------------------------------------------------------------
def _fused_gnn_kernel(*refs, spec, is_qp, hid):
    f32, bf16 = jnp.float32, jnp.bfloat16
    H = hid

    if is_qp:
        c_ref, v_ref, a_ref, q_ref, ws_ref, bs_ref, o_ref = refs
    else:
        c_ref, v_ref, a_ref, ws_ref, bs_ref, o_ref = refs

    def bias(bi):
        return bs_ref[bi:bi + 1, 0:H]                      # [1, H] f32

    def lin_narrow(x_f32, wi, bi, relu=True):
        # [m, H] @ [H, H] MXU matmul, f32 acc, bias(+ReLU) epilogue in f32.
        y = jnp.dot(x_f32.astype(bf16), ws_ref[wi, 0:H, 0:H],
                    preferred_element_type=f32) + bias(bi)
        return jnp.maximum(y, 0.0) if relu else y

    # --- node encoders (Backbone encode MLPs) -------------------------------
    def encode(x_bf16, layers):
        wi, bi = layers[0]                                 # first layer: K = PAD
        y = jnp.dot(x_bf16, ws_ref[wi, :, 0:H], preferred_element_type=f32)
        y = jnp.maximum(y + bias(bi), 0.0)
        for wi, bi in layers[1:]:
            y = lin_narrow(y, wi, bi, relu=True)
        return y                                           # [m, H] f32

    c = encode(c_ref[...], spec["cons_enc"])               # [n_cons, H]
    v = encode(v_ref[...], spec["vars_enc"])               # [n_vars, H]
    a = a_ref[...]                                         # [n_cons, n_vars] bf16

    # --- heterogeneous message-passing conv layers (synchronous updates) ----
    for layer in spec["convs"]:
        # One lane-packed projection matmul per node type:
        #   Wpack_c cols [0:H]   = Wr_c (cons self),   [H:2H] = Wn_v (c -> vars msg)
        #   Wpack_v cols [0:H]   = Wn_c (v -> cons msg), [H:2H] = Wr_v (vars self),
        #           cols [2H:3H] = Wq_v (Q msg, QP only)
        proj_c = jnp.dot(c.astype(bf16), ws_ref[layer["wc"], 0:H, :],
                         preferred_element_type=f32)        # [n_cons, PAD]
        proj_v = jnp.dot(v.astype(bf16), ws_ref[layer["wv"], 0:H, :],
                         preferred_element_type=f32)        # [n_vars, PAD]
        pc16, pv16 = proj_c.astype(bf16), proj_v.astype(bf16)

        # Aggregations reuse the packed projections; no A^T buffer materialized.
        agg_c = jnp.dot(a, pv16, preferred_element_type=f32)          # A   @ proj_v
        agg_v = lax.dot_general(a, pc16, (((0,), (0,)), ((), ())),
                                preferred_element_type=f32)            # A^T @ proj_c

        c_pre = proj_c[:, 0:H] + agg_c[:, 0:H] + bias(layer["bc"])
        v_pre = proj_v[:, H:2 * H] + agg_v[:, H:2 * H] + bias(layer["bv"])
        if is_qp:
            agg_q = jnp.dot(q_ref[...], pv16, preferred_element_type=f32)
            v_pre = v_pre + agg_q[:, 2 * H:3 * H]
        c = jnp.maximum(c_pre, 0.0)
        v = jnp.maximum(v_pre, 0.0)

    # --- graph readout: mean pool over TRUE node counts (rows are unpadded) --
    pc = jnp.mean(c, axis=0, keepdims=True)                 # [1, H]
    pv = jnp.mean(v, axis=0, keepdims=True)                 # [1, H]

    # --- backbone pred MLP on concat(mean_c, mean_v) -------------------------
    # concat expressed as two weight halves: h = relu(pc @ W1 + pv @ W2 + b)
    w1, w2, b0 = spec["backbone_pred_first"]
    h = jnp.maximum(
        jnp.dot(pc.astype(bf16), ws_ref[w1, 0:H, 0:H], preferred_element_type=f32)
        + jnp.dot(pv.astype(bf16), ws_ref[w2, 0:H, 0:H], preferred_element_type=f32)
        + bias(b0), 0.0)
    for wi, bi in spec["backbone_pred_rest"]:
        h = lin_narrow(h, wi, bi, relu=True)

    # --- GNN.predictor MLP (norm=None; final layer without ReLU) -------------
    for wi, bi in spec["predictor"][:-1]:
        h = lin_narrow(h, wi, bi, relu=True)
    wi, bi = spec["predictor"][-1]
    # final matmul over the full 128-wide (zero-padded) weight -> lane-dense store
    o_ref[...] = (jnp.dot(h.astype(bf16), ws_ref[wi, 0:H, :],
                          preferred_element_type=f32) + bs_ref[bi:bi + 1, :])


# ----------------------------------------------------------------------------
# Parameter construction (deterministic, synthetic)
# ----------------------------------------------------------------------------
def _glorot(key, shape):
    fan_in, fan_out = shape
    scale = jnp.sqrt(2.0 / (fan_in + fan_out)).astype(jnp.float32)
    return scale * jax.random.normal(key, shape, dtype=jnp.float32)


def _mlp_params(key, dims):
    keys = jax.random.split(key, len(dims) - 1)
    return [(_glorot(k, (dims[i], dims[i + 1])),
             jnp.zeros((dims[i + 1],), jnp.float32))
            for i, k in enumerate(keys)]


def init_params(key, *, is_qp, cons_dim, vars_dim, hid_dim,
                num_encode_layers, num_conv_layers,
                backbone_pred_layers, num_pred_layers):
    keys = jax.random.split(key, 4 + num_conv_layers)
    params = {
        "cons_enc": _mlp_params(keys[0], [cons_dim] + [hid_dim] * num_encode_layers),
        "vars_enc": _mlp_params(keys[1], [vars_dim] + [hid_dim] * num_encode_layers),
        "convs": [],
        "backbone_pred": _mlp_params(
            keys[2], [2 * hid_dim] + [hid_dim] * backbone_pred_layers),
        "predictor": _mlp_params(
            keys[3], [hid_dim] * num_pred_layers + [1]),
    }
    for li in range(num_conv_layers):
        ck = jax.random.split(keys[4 + li], 5)
        layer = {
            "cons": {"wr": _glorot(ck[0], (hid_dim, hid_dim)),
                     "wn": _glorot(ck[1], (hid_dim, hid_dim)),
                     "b": jnp.zeros((hid_dim,), jnp.float32)},
            "vars": {"wr": _glorot(ck[2], (hid_dim, hid_dim)),
                     "wn": _glorot(ck[3], (hid_dim, hid_dim)),
                     "b": jnp.zeros((hid_dim,), jnp.float32)},
        }
        if is_qp:
            layer["vars"]["wq"] = _glorot(ck[4], (hid_dim, hid_dim))
        params["convs"].append(layer)
    return params


# ----------------------------------------------------------------------------
# Weight packing: zero-pad to [PAD, PAD] / [PAD], lane-pack conv projections,
# stack into one bf16 weight slab + one f32 bias slab, build a static spec.
# ----------------------------------------------------------------------------
def pack_params(params, *, is_qp, hid_dim):
    H = hid_dim
    assert (3 if is_qp else 2) * H <= PAD, "hid_dim too large for lane packing"
    mats, vecs = [], []

    def add_w(w):
        mats.append(jnp.zeros((PAD, PAD), jnp.float32)
                    .at[:w.shape[0], :w.shape[1]].set(w))
        return len(mats) - 1

    def add_b(b):
        vecs.append(jnp.zeros((PAD,), jnp.float32).at[:b.shape[0]].set(b))
        return len(vecs) - 1

    spec = {
        "cons_enc": [(add_w(w), add_b(b)) for w, b in params["cons_enc"]],
        "vars_enc": [(add_w(w), add_b(b)) for w, b in params["vars_enc"]],
        "convs": [],
    }
    for layer in params["convs"]:
        wc = (jnp.zeros((PAD, PAD), jnp.float32)
              .at[:H, 0:H].set(layer["cons"]["wr"])            # cons self-term
              .at[:H, H:2 * H].set(layer["vars"]["wn"]))       # c -> vars message proj
        wv = (jnp.zeros((PAD, PAD), jnp.float32)
              .at[:H, 0:H].set(layer["cons"]["wn"])            # v -> cons message proj
              .at[:H, H:2 * H].set(layer["vars"]["wr"]))       # vars self-term
        if is_qp:
            wv = wv.at[:H, 2 * H:3 * H].set(layer["vars"]["wq"])  # Q message proj
        mats.append(wc); wci = len(mats) - 1
        mats.append(wv); wvi = len(mats) - 1
        spec["convs"].append({"wc": wci, "wv": wvi,
                              "bc": add_b(layer["cons"]["b"]),
                              "bv": add_b(layer["vars"]["b"])})

    # backbone_pred first layer: split [2*hid, hid] into cons-half / vars-half
    (w0, b0), *rest = params["backbone_pred"]
    spec["backbone_pred_first"] = (add_w(w0[:H, :]), add_w(w0[H:, :]), add_b(b0))
    spec["backbone_pred_rest"] = [(add_w(w), add_b(b)) for w, b in rest]
    spec["predictor"] = [(add_w(w), add_b(b)) for w, b in params["predictor"]]

    ws = jnp.stack(mats).astype(jnp.bfloat16)   # [n_mats, PAD, PAD] bf16
    bs = jnp.stack(vecs)                        # [n_vecs, PAD]      f32
    return ws, bs, spec


# ----------------------------------------------------------------------------
# Forward pass: ONE pallas_call over a batch of same-shape graphs
# ----------------------------------------------------------------------------
def gnn_forward(ws, bs, spec, data, *, is_qp, hid_dim):
    c = data["cons_feat"]                       # [B, n_cons, cons_dim] f32
    v = data["vars_feat"]                       # [B, n_vars, vars_dim] f32
    a = data["A"]                               # [B, n_cons, n_vars]   f32
    B, n_cons, _ = c.shape
    n_vars = v.shape[1]

    def pad_feat(x):
        return jnp.pad(x, ((0, 0), (0, 0),
                           (0, PAD - x.shape[-1]))).astype(jnp.bfloat16)

    inputs = [pad_feat(c), pad_feat(v), a.astype(jnp.bfloat16)]
    in_specs = [
        pl.BlockSpec((None, n_cons, PAD), lambda b: (b, 0, 0)),
        pl.BlockSpec((None, n_vars, PAD), lambda b: (b, 0, 0)),
        pl.BlockSpec((None, n_cons, n_vars), lambda b: (b, 0, 0)),
    ]
    if is_qp:
        inputs.append(data["Q"].astype(jnp.bfloat16))
        in_specs.append(pl.BlockSpec((None, n_vars, n_vars), lambda b: (b, 0, 0)))
    # Weight/bias slabs: block index pinned to 0 -> VMEM-resident across the
    # whole batch grid (loaded once, no per-graph re-DMA).
    inputs += [ws, bs]
    in_specs += [
        pl.BlockSpec(ws.shape, lambda b: (0, 0, 0)),
        pl.BlockSpec(bs.shape, lambda b: (0, 0)),
    ]

    out = pl.pallas_call(
        functools.partial(_fused_gnn_kernel, spec=spec, is_qp=is_qp, hid=hid_dim),
        grid=(B,),
        in_specs=in_specs,
        out_specs=pl.BlockSpec((None, 1, PAD), lambda b: (b, 0, 0)),
        out_shape=jax.ShapeDtypeStruct((B, 1, PAD), jnp.float32),
        compiler_params=pltpu.CompilerParams(
            dimension_semantics=("parallel",),        # megacore sharding on v7x
            vmem_limit_bytes=32 * 1024 * 1024),
    )(*inputs)
    return out[:, 0, 0]                          # [B] per-graph scalar (x.squeeze())


# ----------------------------------------------------------------------------
# Driver
# ----------------------------------------------------------------------------
if __name__ == "__main__":
    HID_DIM = 32
    NUM_ENCODE_LAYERS = 2
    NUM_CONV_LAYERS = 2
    NUM_PRED_LAYERS = 2
    BACKBONE_PRED_LAYERS = 2

    BATCH = 4                     # graphs per launch (one grid step per graph)
    N_CONS, N_VARS = 16, 24
    CONS_DIM, VARS_DIM = 4, 6

    key = jax.random.PRNGKey(0)
    k1, k2, k3, k4 = jax.random.split(key, 4)
    cons_feat = jax.random.normal(k1, (BATCH, N_CONS, CONS_DIM), dtype=jnp.float32)
    vars_feat = jax.random.normal(k2, (BATCH, N_VARS, VARS_DIM), dtype=jnp.float32)
    A = jax.random.normal(k3, (BATCH, N_CONS, N_VARS), dtype=jnp.float32)
    Q = jax.random.normal(k4, (BATCH, N_VARS, N_VARS), dtype=jnp.float32)
    Q = 0.5 * (Q + jnp.swapaxes(Q, -1, -2))

    common = dict(cons_dim=CONS_DIM, vars_dim=VARS_DIM, hid_dim=HID_DIM,
                  num_encode_layers=NUM_ENCODE_LAYERS,
                  num_conv_layers=NUM_CONV_LAYERS,
                  backbone_pred_layers=BACKBONE_PRED_LAYERS,
                  num_pred_layers=NUM_PRED_LAYERS)

    # --- QP variant (with vars-vars quadratic adjacency Q) ---
    data_qp = {"cons_feat": cons_feat, "vars_feat": vars_feat, "A": A, "Q": Q}
    params_qp = init_params(jax.random.PRNGKey(42), is_qp=True, **common)
    ws_qp, bs_qp, spec_qp = pack_params(params_qp, is_qp=True, hid_dim=HID_DIM)
    out_qp = gnn_forward(ws_qp, bs_qp, spec_qp, data_qp, is_qp=True, hid_dim=HID_DIM)
    out_qp = jax.block_until_ready(out_qp)
    assert out_qp.shape == (BATCH,), f"expected ({BATCH},), got {out_qp.shape}"

    # --- LP variant (is_qp=False): kernel compiled WITHOUT q_ref, no zero-Q DMA ---
    data_lp = {"cons_feat": cons_feat, "vars_feat": vars_feat, "A": A}
    params_lp = init_params(jax.random.PRNGKey(43), is_qp=False, **common)
    ws_lp, bs_lp, spec_lp = pack_params(params_lp, is_qp=False, hid_dim=HID_DIM)
    out_lp = gnn_forward(ws_lp, bs_lp, spec_lp, data_lp, is_qp=False, hid_dim=HID_DIM)
    out_lp = jax.block_until_ready(out_lp)
    assert out_lp.shape == (BATCH,), f"expected ({BATCH},), got {out_lp.shape}"

    print("KERNEL_OK")
</pallas_src>

<mosaic_0001>
module attributes {stable_mosaic.version = 11 : i64} {
  func.func @_fused_gnn_kernel(%arg0: i32, %arg1: memref<1x16x128xbf16, #tpu.memory_space<vmem>>, %arg2: memref<1x24x128xbf16, #tpu.memory_space<vmem>>, %arg3: memref<1x16x24xbf16, #tpu.memory_space<vmem>>, %arg4: memref<1x24x24xbf16, #tpu.memory_space<vmem>>, %arg5: memref<13x128x128xbf16, #tpu.memory_space<vmem>>, %arg6: memref<12x128xf32, #tpu.memory_space<vmem>>, %arg7: memref<1x1x128xf32, #tpu.memory_space<vmem>>) attributes {dimension_semantics = [#tpu.dimension_semantics<parallel>], iteration_bounds = array<i64: 4>, scalar_prefetch = 0 : i64, scratch_operands = 0 : i64, tpu.core_type = #tpu.core_type<tc>, window_params = [{transform_indices = @transform_0, window_bounds = array<i64: 1, 16, 128>}, {transform_indices = @transform_1, window_bounds = array<i64: 1, 24, 128>}, {transform_indices = @transform_2, window_bounds = array<i64: 1, 16, 24>}, {transform_indices = @transform_3, window_bounds = array<i64: 1, 24, 24>}, {pipeline_mode = #tpu.pipeline_mode<synchronous>, transform_indices = @transform_4, window_bounds = array<i64: 13, 128, 128>}, {pipeline_mode = #tpu.pipeline_mode<synchronous>, transform_indices = @transform_5, window_bounds = array<i64: 12, 128>}, {transform_indices = @transform_6, window_bounds = array<i64: 1, 1, 128>}]} {
    %c0 = arith.constant 0 : index
    %c0_0 = arith.constant 0 : index
    %c0_1 = arith.constant 0 : index
    %0 = vector.load %arg1[%c0, %c0_0, %c0_1] : memref<1x16x128xbf16, #tpu.memory_space<vmem>>, vector<1x16x128xbf16>
    %1 = vector.shape_cast %0 : vector<1x16x128xbf16> to vector<16x128xbf16>
    %c0_2 = arith.constant 0 : index
    %c0_3 = arith.constant 0 : index
    %c0_4 = arith.constant 0 : index
    %2 = vector.load %arg5[%c0_2, %c0_3, %c0_4] : memref<13x128x128xbf16, #tpu.memory_space<vmem>>, vector<1x128x32xbf16>
    %3 = vector.shape_cast %2 : vector<1x128x32xbf16> to vector<128x32xbf16>
    %cst = arith.constant dense<0.000000e+00> : vector<16x32xf32>
    %4 = tpu.matmul %1, %3, %cst {dimension_numbers = #tpu.dot_dimension_numbers<[1], [0], [0], [1], [0, 0, 1, 1], [], []>} : vector<16x128xbf16>, vector<128x32xbf16>, vector<16x32xf32> -> vector<16x32xf32>
    %c0_5 = arith.constant 0 : index
    %c0_6 = arith.constant 0 : index
    %5 = vector.load %arg6[%c0_5, %c0_6] : memref<12x128xf32, #tpu.memory_space<vmem>>, vector<1x32xf32>
    %6 = vector.broadcast %5 : vector<1x32xf32> to vector<16x32xf32>
    %7 = arith.addf %4, %6 : vector<16x32xf32>
    %cst_7 = arith.constant 0.000000e+00 : f32
    %8 = vector.broadcast %cst_7 : f32 to vector<16x32xf32>
    %9 = arith.maximumf %7, %8 : vector<16x32xf32>
    %10 = arith.truncf %9 : vector<16x32xf32> to vector<16x32xbf16>
    %c1 = arith.constant 1 : index
    %c0_8 = arith.constant 0 : index
    %c0_9 = arith.constant 0 : index
    %11 = vector.load %arg5[%c1, %c0_8, %c0_9] : memref<13x128x128xbf16, #tpu.memory_space<vmem>>, vector<1x32x32xbf16>
    %12 = vector.shape_cast %11 : vector<1x32x32xbf16> to vector<32x32xbf16>
    %cst_10 = arith.constant dense<0.000000e+00> : vector<16x32xf32>
    %13 = tpu.matmul %10, %12, %cst_10 {dimension_numbers = #tpu.dot_dimension_numbers<[1], [0], [0], [1], [0, 0, 1, 1], [], []>} : vector<16x32xbf16>, vector<32x32xbf16>, vector<16x32xf32> -> vector<16x32xf32>
    %c1_11 = arith.constant 1 : index
    %c0_12 = arith.constant 0 : index
    %14 = vector.load %arg6[%c1_11, %c0_12] : memref<12x128xf32, #tpu.memory_space<vmem>>, vector<1x32xf32>
    %15 = vector.broadcast %14 : vector<1x32xf32> to vector<16x32xf32>
    %16 = arith.addf %13, %15 : vector<16x32xf32>
    %cst_13 = arith.constant 0.000000e+00 : f32
    %17 = vector.broadcast %cst_13 : f32 to vector<16x32xf32>
    %18 = arith.maximumf %16, %17 : vector<16x32xf32>
    %c0_14 = arith.constant 0 : index
    %c0_15 = arith.constant 0 : index
    %c0_16 = arith.constant 0 : index
    %19 = vector.load %arg2[%c0_14, %c0_15, %c0_16] : memref<1x24x128xbf16, #tpu.memory_space<vmem>>, vector<1x24x128xbf16>
    %20 = vector.shape_cast %19 : vector<1x24x128xbf16> to vector<24x128xbf16>
    %c2 = arith.constant 2 : index
    %c0_17 = arith.constant 0 : index
    %c0_18 = arith.constant 0 : index
    %21 = vector.load %arg5[%c2, %c0_17, %c0_18] : memref<13x128x128xbf16, #tpu.memory_space<vmem>>, vector<1x128x32xbf16>
    %22 = vector.shape_cast %21 : vector<1x128x32xbf16> to vector<128x32xbf16>
    %cst_19 = arith.constant dense<0.000000e+00> : vector<24x32xf32>
    %23 = tpu.matmul %20, %22, %cst_19 {dimension_numbers = #tpu.dot_dimension_numbers<[1], [0], [0], [1], [0, 0, 1, 1], [], []>} : vector<24x128xbf16>, vector<128x32xbf16>, vector<24x32xf32> -> vector<24x32xf32>
    %c2_20 = arith.constant 2 : index
    %c0_21 = arith.constant 0 : index
    %24 = vector.load %arg6[%c2_20, %c0_21] : memref<12x128xf32, #tpu.memory_space<vmem>>, vector<1x32xf32>
    %25 = vector.broadcast %24 : vector<1x32xf32> to vector<24x32xf32>
    %26 = arith.addf %23, %25 : vector<24x32xf32>
    %cst_22 = arith.constant 0.000000e+00 : f32
    %27 = vector.broadcast %cst_22 : f32 to vector<24x32xf32>
    %28 = arith.maximumf %26, %27 : vector<24x32xf32>
    %29 = arith.truncf %28 : vector<24x32xf32> to vector<24x32xbf16>
    %c3 = arith.constant 3 : index
    %c0_23 = arith.constant 0 : index
    %c0_24 = arith.constant 0 : index
    %30 = vector.load %arg5[%c3, %c0_23, %c0_24] : memref<13x128x128xbf16, #tpu.memory_space<vmem>>, vector<1x32x32xbf16>
    %31 = vector.shape_cast %30 : vector<1x32x32xbf16> to vector<32x32xbf16>
    %cst_25 = arith.constant dense<0.000000e+00> : vector<24x32xf32>
    %32 = tpu.matmul %29, %31, %cst_25 {dimension_numbers = #tpu.dot_dimension_numbers<[1], [0], [0], [1], [0, 0, 1, 1], [], []>} : vector<24x32xbf16>, vector<32x32xbf16>, vector<24x32xf32> -> vector<24x32xf32>
    %c3_26 = arith.constant 3 : index
    %c0_27 = arith.constant 0 : index
    %33 = vector.load %arg6[%c3_26, %c0_27] : memref<12x128xf32, #tpu.memory_space<vmem>>, vector<1x32xf32>
    %34 = vector.broadcast %33 : vector<1x32xf32> to vector<24x32xf32>
    %35 = arith.addf %32, %34 : vector<24x32xf32>
    %cst_28 = arith.constant 0.000000e+00 : f32
    %36 = vector.broadcast %cst_28 : f32 to vector<24x32xf32>
    %37 = arith.maximumf %35, %36 : vector<24x32xf32>
    %c0_29 = arith.constant 0 : index
    %c0_30 = arith.constant 0 : index
    %c0_31 = arith.constant 0 : index
    %38 = vector.load %arg3[%c0_29, %c0_30, %c0_31] : memref<1x16x24xbf16, #tpu.memory_space<vmem>>, vector<1x16x24xbf16>
    %39 = vector.shape_cast %38 : vector<1x16x24xbf16> to vector<16x24xbf16>
    %40 = arith.truncf %18 : vector<16x32xf32> to vector<16x32xbf16>
    %c4 = arith.constant 4 : index
    %c0_32 = arith.constant 0 : index
    %c0_33 = arith.constant 0 : index
    %41 = vector.load %arg5[%c4, %c0_32, %c0_33] : memref<13x128x128xbf16, #tpu.memory_space<vmem>>, vector<1x32x128xbf16>
    %42 = vector.shape_cast %41 : vector<1x32x128xbf16> to vector<32x128xbf16>
    %cst_34 = arith.constant dense<0.000000e+00> : vector<16x128xf32>
    %43 = tpu.matmul %40, %42, %cst_34 {dimension_numbers = #tpu.dot_dimension_numbers<[1], [0], [0], [1], [0, 0, 1, 1], [], []>} : vector<16x32xbf16>, vector<32x128xbf16>, vector<16x128xf32> -> vector<16x128xf32>
    %44 = arith.truncf %37 : vector<24x32xf32> to vector<24x32xbf16>
    %c5 = arith.constant 5 : index
    %c0_35 = arith.constant 0 : index
    %c0_36 = arith.constant 0 : index
    %45 = vector.load %arg5[%c5, %c0_35, %c0_36] : memref<13x128x128xbf16, #tpu.memory_space<vmem>>, vector<1x32x128xbf16>
    %46 = vector.shape_cast %45 : vector<1x32x128xbf16> to vector<32x128xbf16>
    %cst_37 = arith.constant dense<0.000000e+00> : vector<24x128xf32>
    %47 = tpu.matmul %44, %46, %cst_37 {dimension_numbers = #tpu.dot_dimension_numbers<[1], [0], [0], [1], [0, 0, 1, 1], [], []>} : vector<24x32xbf16>, vector<32x128xbf16>, vector<24x128xf32> -> vector<24x128xf32>
    %48 = arith.truncf %43 : vector<16x128xf32> to vector<16x128xbf16>
    %49 = arith.truncf %47 : vector<24x128xf32> to vector<24x128xbf16>
    %cst_38 = arith.constant dense<0.000000e+00> : vector<16x128xf32>
    %50 = tpu.matmul %39, %49, %cst_38 {dimension_numbers = #tpu.dot_dimension_numbers<[1], [0], [0], [1], [0, 0, 1, 1], [], []>} : vector<16x24xbf16>, vector<24x128xbf16>, vector<16x128xf32> -> vector<16x128xf32>
    %cst_39 = arith.constant dense<0.000000e+00> : vector<24x128xf32>
    %51 = tpu.matmul %39, %48, %cst_39 {dimension_numbers = #tpu.dot_dimension_numbers<[0], [0], [1], [1], [0, 1, 1, 1], [], []>} : vector<16x24xbf16>, vector<16x128xbf16>, vector<24x128xf32> -> vector<24x128xf32>
    %52 = vector.extract_strided_slice %43 {offsets = [0, 0], sizes = [16, 32], strides = [1, 1]} : vector<16x128xf32> to vector<16x32xf32>
    %53 = vector.extract_strided_slice %50 {offsets = [0, 0], sizes = [16, 32], strides = [1, 1]} : vector<16x128xf32> to vector<16x32xf32>
    %54 = arith.addf %52, %53 : vector<16x32xf32>
    %c4_40 = arith.constant 4 : index
    %c0_41 = arith.constant 0 : index
    %55 = vector.load %arg6[%c4_40, %c0_41] : memref<12x128xf32, #tpu.memory_space<vmem>>, vector<1x32xf32>
    %56 = vector.broadcast %55 : vector<1x32xf32> to vector<16x32xf32>
    %57 = arith.addf %54, %56 : vector<16x32xf32>
    %58 = vector.extract_strided_slice %47 {offsets = [0, 32], sizes = [24, 32], strides = [1, 1]} : vector<24x128xf32> to vector<24x32xf32>
    %59 = vector.extract_strided_slice %51 {offsets = [0, 32], sizes = [24, 32], strides = [1, 1]} : vector<24x128xf32> to vector<24x32xf32>
    %60 = arith.addf %58, %59 : vector<24x32xf32>
    %c5_42 = arith.constant 5 : index
    %c0_43 = arith.constant 0 : index
    %61 = vector.load %arg6[%c5_42, %c0_43] : memref<12x128xf32, #tpu.memory_space<vmem>>, vector<1x32xf32>
    %62 = vector.broadcast %61 : vector<1x32xf32> to vector<24x32xf32>
    %63 = arith.addf %60, %62 : vector<24x32xf32>
    %c0_44 = arith.constant 0 : index
    %c0_45 = arith.constant 0 : index
    %c0_46 = arith.constant 0 : index
    %64 = vector.load %arg4[%c0_44, %c0_45, %c0_46] : memref<1x24x24xbf16, #tpu.memory_space<vmem>>, vector<1x24x24xbf16>
    %65 = vector.shape_cast %64 : vector<1x24x24xbf16> to vector<24x24xbf16>
    %cst_47 = arith.constant dense<0.000000e+00> : vector<24x128xf32>
    %66 = tpu.matmul %65, %49, %cst_47 {dimension_numbers = #tpu.dot_dimension_numbers<[1], [0], [0], [1], [0, 0, 1, 1], [], []>} : vector<24x24xbf16>, vector<24x128xbf16>, vector<24x128xf32> -> vector<24x128xf32>
    %67 = vector.extract_strided_slice %66 {offsets = [0, 64], sizes = [24, 32], strides = [1, 1]} : vector<24x128xf32> to vector<24x32xf32>
    %68 = arith.addf %63, %67 : vector<24x32xf32>
    %cst_48 = arith.constant 0.000000e+00 : f32
    %69 = vector.broadcast %cst_48 : f32 to vector<16x32xf32>
    %70 = arith.maximumf %57, %69 : vector<16x32xf32>
    %cst_49 = arith.constant 0.000000e+00 : f32
    %71 = vector.broadcast %cst_49 : f32 to vector<24x32xf32>
    %72 = arith.maximumf %68, %71 : vector<24x32xf32>
    %73 = arith.truncf %70 : vector<16x32xf32> to vector<16x32xbf16>
    %c6 = arith.constant 6 : index
    %c0_50 = arith.constant 0 : index
    %c0_51 = arith.constant 0 : index
    %74 = vector.load %arg5[%c6, %c0_50, %c0_51] : memref<13x128x128xbf16, #tpu.memory_space<vmem>>, vector<1x32x128xbf16>
    %75 = vector.shape_cast %74 : vector<1x32x128xbf16> to vector<32x128xbf16>
    %cst_52 = arith.constant dense<0.000000e+00> : vector<16x128xf32>
    %76 = tpu.matmul %73, %75, %cst_52 {dimension_numbers = #tpu.dot_dimension_numbers<[1], [0], [0], [1], [0, 0, 1, 1], [], []>} : vector<16x32xbf16>, vector<32x128xbf16>, vector<16x128xf32> -> vector<16x128xf32>
    %77 = arith.truncf %72 : vector<24x32xf32> to vector<24x32xbf16>
    %c7 = arith.constant 7 : index
    %c0_53 = arith.constant 0 : index
    %c0_54 = arith.constant 0 : index
    %78 = vector.load %arg5[%c7, %c0_53, %c0_54] : memref<13x128x128xbf16, #tpu.memory_space<vmem>>, vector<1x32x128xbf16>
    %79 = vector.shape_cast %78 : vector<1x32x128xbf16> to vector<32x128xbf16>
    %cst_55 = arith.constant dense<0.000000e+00> : vector<24x128xf32>
    %80 = tpu.matmul %77, %79, %cst_55 {dimension_numbers = #tpu.dot_dimension_numbers<[1], [0], [0], [1], [0, 0, 1, 1], [], []>} : vector<24x32xbf16>, vector<32x128xbf16>, vector<24x128xf32> -> vector<24x128xf32>
    %81 = arith.truncf %76 : vector<16x128xf32> to vector<16x128xbf16>
    %82 = arith.truncf %80 : vector<24x128xf32> to vector<24x128xbf16>
    %cst_56 = arith.constant dense<0.000000e+00> : vector<16x128xf32>
    %83 = tpu.matmul %39, %82, %cst_56 {dimension_numbers = #tpu.dot_dimension_numbers<[1], [0], [0], [1], [0, 0, 1, 1], [], []>} : vector<16x24xbf16>, vector<24x128xbf16>, vector<16x128xf32> -> vector<16x128xf32>
    %cst_57 = arith.constant dense<0.000000e+00> : vector<24x128xf32>
    %84 = tpu.matmul %39, %81, %cst_57 {dimension_numbers = #tpu.dot_dimension_numbers<[0], [0], [1], [1], [0, 1, 1, 1], [], []>} : vector<16x24xbf16>, vector<16x128xbf16>, vector<24x128xf32> -> vector<24x128xf32>
    %85 = vector.extract_strided_slice %76 {offsets = [0, 0], sizes = [16, 32], strides = [1, 1]} : vector<16x128xf32> to vector<16x32xf32>
    %86 = vector.extract_strided_slice %83 {offsets = [0, 0], sizes = [16, 32], strides = [1, 1]} : vector<16x128xf32> to vector<16x32xf32>
    %87 = arith.addf %85, %86 : vector<16x32xf32>
    %c6_58 = arith.constant 6 : index
    %c0_59 = arith.constant 0 : index
    %88 = vector.load %arg6[%c6_58, %c0_59] : memref<12x128xf32, #tpu.memory_space<vmem>>, vector<1x32xf32>
    %89 = vector.broadcast %88 : vector<1x32xf32> to vector<16x32xf32>
    %90 = arith.addf %87, %89 : vector<16x32xf32>
    %91 = vector.extract_strided_slice %80 {offsets = [0, 32], sizes = [24, 32], strides = [1, 1]} : vector<24x128xf32> to vector<24x32xf32>
    %92 = vector.extract_strided_slice %84 {offsets = [0, 32], sizes = [24, 32], strides = [1, 1]} : vector<24x128xf32> to vector<24x32xf32>
    %93 = arith.addf %91, %92 : vector<24x32xf32>
    %c7_60 = arith.constant 7 : index
    %c0_61 = arith.constant 0 : index
    %94 = vector.load %arg6[%c7_60, %c0_61] : memref<12x128xf32, #tpu.memory_space<vmem>>, vector<1x32xf32>
    %95 = vector.broadcast %94 : vector<1x32xf32> to vector<24x32xf32>
    %96 = arith.addf %93, %95 : vector<24x32xf32>
    %c0_62 = arith.constant 0 : index
    %c0_63 = arith.constant 0 : index
    %c0_64 = arith.constant 0 : index
    %97 = vector.load %arg4[%c0_62, %c0_63, %c0_64] : memref<1x24x24xbf16, #tpu.memory_space<vmem>>, vector<1x24x24xbf16>
    %98 = vector.shape_cast %97 : vector<1x24x24xbf16> to vector<24x24xbf16>
    %cst_65 = arith.constant dense<0.000000e+00> : vector<24x128xf32>
    %99 = tpu.matmul %98, %82, %cst_65 {dimension_numbers = #tpu.dot_dimension_numbers<[1], [0], [0], [1], [0, 0, 1, 1], [], []>} : vector<24x24xbf16>, vector<24x128xbf16>, vector<24x128xf32> -> vector<24x128xf32>
    %100 = vector.extract_strided_slice %99 {offsets = [0, 64], sizes = [24, 32], strides = [1, 1]} : vector<24x128xf32> to vector<24x32xf32>
    %101 = arith.addf %96, %100 : vector<24x32xf32>
    %cst_66 = arith.constant 0.000000e+00 : f32
    %102 = vector.broadcast %cst_66 : f32 to vector<16x32xf32>
    %103 = arith.maximumf %90, %102 : vector<16x32xf32>
    %cst_67 = arith.constant 0.000000e+00 : f32
    %104 = vector.broadcast %cst_67 : f32 to vector<24x32xf32>
    %105 = arith.maximumf %101, %104 : vector<24x32xf32>
    %cst_68 = arith.constant dense<0.000000e+00> : vector<32xf32>
    %106 = vector.multi_reduction <add>, %103, %cst_68 [0] : vector<16x32xf32> to vector<32xf32>
    %107 = vector.shape_cast %106 : vector<32xf32> to vector<1x32xf32>
    %cst_69 = arith.constant 1.600000e+01 : f32
    %108 = vector.broadcast %cst_69 : f32 to vector<1x32xf32>
    %109 = arith.divf %107, %108 : vector<1x32xf32>
    %cst_70 = arith.constant dense<0.000000e+00> : vector<32xf32>
    %110 = vector.multi_reduction <add>, %105, %cst_70 [0] : vector<24x32xf32> to vector<32xf32>
    %111 = vector.shape_cast %110 : vector<32xf32> to vector<1x32xf32>
    %cst_71 = arith.constant 2.400000e+01 : f32
    %112 = vector.broadcast %cst_71 : f32 to vector<1x32xf32>
    %113 = arith.divf %111, %112 : vector<1x32xf32>
    %114 = arith.truncf %109 : vector<1x32xf32> to vector<1x32xbf16>
    %c8 = arith.constant 8 : index
    %c0_72 = arith.constant 0 : index
    %c0_73 = arith.constant 0 : index
    %115 = vector.load %arg5[%c8, %c0_72, %c0_73] : memref<13x128x128xbf16, #tpu.memory_space<vmem>>, vector<1x32x32xbf16>
    %116 = vector.shape_cast %115 : vector<1x32x32xbf16> to vector<32x32xbf16>
    %cst_74 = arith.constant dense<0.000000e+00> : vector<1x32xf32>
    %117 = tpu.matmul %114, %116, %cst_74 {dimension_numbers = #tpu.dot_dimension_numbers<[1], [0], [0], [1], [0, 0, 1, 1], [], []>} : vector<1x32xbf16>, vector<32x32xbf16>, vector<1x32xf32> -> vector<1x32xf32>
    %118 = arith.truncf %113 : vector<1x32xf32> to vector<1x32xbf16>
    %c9 = arith.constant 9 : index
    %c0_75 = arith.constant 0 : index
    %c0_76 = arith.constant 0 : index
    %119 = vector.load %arg5[%c9, %c0_75, %c0_76] : memref<13x128x128xbf16, #tpu.memory_space<vmem>>, vector<1x32x32xbf16>
    %120 = vector.shape_cast %119 : vector<1x32x32xbf16> to vector<32x32xbf16>
    %cst_77 = arith.constant dense<0.000000e+00> : vector<1x32xf32>
    %121 = tpu.matmul %118, %120, %cst_77 {dimension_numbers = #tpu.dot_dimension_numbers<[1], [0], [0], [1], [0, 0, 1, 1], [], []>} : vector<1x32xbf16>, vector<32x32xbf16>, vector<1x32xf32> -> vector<1x32xf32>
    %122 = arith.addf %117, %121 : vector<1x32xf32>
    %c8_78 = arith.constant 8 : index
    %c0_79 = arith.constant 0 : index
    %123 = vector.load %arg6[%c8_78, %c0_79] : memref<12x128xf32, #tpu.memory_space<vmem>>, vector<1x32xf32>
    %124 = arith.addf %122, %123 : vector<1x32xf32>
    %cst_80 = arith.constant 0.000000e+00 : f32
    %125 = vector.broadcast %cst_80 : f32 to vector<1x32xf32>
    %126 = arith.maximumf %124, %125 : vector<1x32xf32>
    %127 = arith.truncf %126 : vector<1x32xf32> to vector<1x32xbf16>
    %c10 = arith.constant 10 : index
    %c0_81 = arith.constant 0 : index
    %c0_82 = arith.constant 0 : index
    %128 = vector.load %arg5[%c10, %c0_81, %c0_82] : memref<13x128x128xbf16, #tpu.memory_space<vmem>>, vector<1x32x32xbf16>
    %129 = vector.shape_cast %128 : vector<1x32x32xbf16> to vector<32x32xbf16>
    %cst_83 = arith.constant dense<0.000000e+00> : vector<1x32xf32>
    %130 = tpu.matmul %127, %129, %cst_83 {dimension_numbers = #tpu.dot_dimension_numbers<[1], [0], [0], [1], [0, 0, 1, 1], [], []>} : vector<1x32xbf16>, vector<32x32xbf16>, vector<1x32xf32> -> vector<1x32xf32>
    %c9_84 = arith.constant 9 : index
    %c0_85 = arith.constant 0 : index
    %131 = vector.load %arg6[%c9_84, %c0_85] : memref<12x128xf32, #tpu.memory_space<vmem>>, vector<1x32xf32>
    %132 = arith.addf %130, %131 : vector<1x32xf32>
    %cst_86 = arith.constant 0.000000e+00 : f32
    %133 = vector.broadcast %cst_86 : f32 to vector<1x32xf32>
    %134 = arith.maximumf %132, %133 : vector<1x32xf32>
    %135 = arith.truncf %134 : vector<1x32xf32> to vector<1x32xbf16>
    %c11 = arith.constant 11 : index
    %c0_87 = arith.constant 0 : index
    %c0_88 = arith.constant 0 : index
    %136 = vector.load %arg5[%c11, %c0_87, %c0_88] : memref<13x128x128xbf16, #tpu.memory_space<vmem>>, vector<1x32x32xbf16>
    %137 = vector.shape_cast %136 : vector<1x32x32xbf16> to vector<32x32xbf16>
    %cst_89 = arith.constant dense<0.000000e+00> : vector<1x32xf32>
    %138 = tpu.matmul %135, %137, %cst_89 {dimension_numbers = #tpu.dot_dimension_numbers<[1], [0], [0], [1], [0, 0, 1, 1], [], []>} : vector<1x32xbf16>, vector<32x32xbf16>, vector<1x32xf32> -> vector<1x32xf32>
    %c10_90 = arith.constant 10 : index
    %c0_91 = arith.constant 0 : index
    %139 = vector.load %arg6[%c10_90, %c0_91] : memref<12x128xf32, #tpu.memory_space<vmem>>, vector<1x32xf32>
    %140 = arith.addf %138, %139 : vector<1x32xf32>
    %cst_92 = arith.constant 0.000000e+00 : f32
    %141 = vector.broadcast %cst_92 : f32 to vector<1x32xf32>
    %142 = arith.maximumf %140, %141 : vector<1x32xf32>
    %143 = arith.truncf %142 : vector<1x32xf32> to vector<1x32xbf16>
    %c12 = arith.constant 12 : index
    %c0_93 = arith.constant 0 : index
    %c0_94 = arith.constant 0 : index
    %144 = vector.load %arg5[%c12, %c0_93, %c0_94] : memref<13x128x128xbf16, #tpu.memory_space<vmem>>, vector<1x32x128xbf16>
    %145 = vector.shape_cast %144 : vector<1x32x128xbf16> to vector<32x128xbf16>
    %cst_95 = arith.constant dense<0.000000e+00> : vector<1x128xf32>
    %146 = tpu.matmul %143, %145, %cst_95 {dimension_numbers = #tpu.dot_dimension_numbers<[1], [0], [0], [1], [0, 0, 1, 1], [], []>} : vector<1x32xbf16>, vector<32x128xbf16>, vector<1x128xf32> -> vector<1x128xf32>
    %c11_96 = arith.constant 11 : index
    %c0_97 = arith.constant 0 : index
    %147 = vector.load %arg6[%c11_96, %c0_97] : memref<12x128xf32, #tpu.memory_space<vmem>>, vector<1x128xf32>
    %148 = arith.addf %146, %147 : vector<1x128xf32>
    %c0_98 = arith.constant 0 : index
    %c0_99 = arith.constant 0 : index
    %c0_100 = arith.constant 0 : index
    %149 = vector.load %arg7[%c0_98, %c0_99, %c0_100] : memref<1x1x128xf32, #tpu.memory_space<vmem>>, vector<1x1x128xf32>
    %150 = vector.shape_cast %149 : vector<1x1x128xf32> to vector<1x128xf32>
    %151 = vector.shape_cast %148 : vector<1x128xf32> to vector<1x1x128xf32>
    tpu.vector_store %arg7[%c0_98, %c0_99, %c0_100], %151 {strides = array<i32>} : memref<1x1x128xf32, #tpu.memory_space<vmem>>, vector<1x1x128xf32>,
    return
  }
  func.func @transform_0(%arg0: i32) -> (i32, i32, i32) {
    %c0_i32 = arith.constant 0 : i32
    %c0_i32_0 = arith.constant 0 : i32
    %c0_i32_1 = arith.constant 0 : i32
    return %arg0, %c0_i32, %c0_i32_0 : i32, i32, i32
  }
  func.func @transform_1(%arg0: i32) -> (i32, i32, i32) {
    %c0_i32 = arith.constant 0 : i32
    %c0_i32_0 = arith.constant 0 : i32
    %c0_i32_1 = arith.constant 0 : i32
    return %arg0, %c0_i32, %c0_i32_0 : i32, i32, i32
  }
  func.func @transform_2(%arg0: i32) -> (i32, i32, i32) {
    %c0_i32 = arith.constant 0 : i32
    %c0_i32_0 = arith.constant 0 : i32
    %c0_i32_1 = arith.constant 0 : i32
    return %arg0, %c0_i32, %c0_i32_0 : i32, i32, i32
  }
  func.func @transform_3(%arg0: i32) -> (i32, i32, i32) {
    %c0_i32 = arith.constant 0 : i32
    %c0_i32_0 = arith.constant 0 : i32
    %c0_i32_1 = arith.constant 0 : i32
    return %arg0, %c0_i32, %c0_i32_0 : i32, i32, i32
  }
  func.func @transform_4(%arg0: i32) -> (i32, i32, i32) {
    %c0_i32 = arith.constant 0 : i32
    %c0_i32_0 = arith.constant 0 : i32
    %c0_i32_1 = arith.constant 0 : i32
    %c0_i32_2 = arith.constant 0 : i32
    return %c0_i32, %c0_i32_0, %c0_i32_1 : i32, i32, i32
  }
  func.func @transform_5(%arg0: i32) -> (i32, i32) {
    %c0_i32 = arith.constant 0 : i32
    %c0_i32_0 = arith.constant 0 : i32
    %c0_i32_1 = arith.constant 0 : i32
    return %c0_i32, %c0_i32_0 : i32, i32
  }
  func.func @transform_6(%arg0: i32) -> (i32, i32, i32) {
    %c0_i32 = arith.constant 0 : i32
    %c0_i32_0 = arith.constant 0 : i32
    %c0_i32_1 = arith.constant 0 : i32
    return %arg0, %c0_i32, %c0_i32_0 : i32, i32, i32
  }
}

</mosaic_0001>

<llo_original>
// kernel: tpu_custom_call.1
$region0: #{tpu_custom_call.1}
  #allocation0 [shape = 'u32[]', space=smem, size = 0x4, offset = 0x4, fixed_abs, tag = 'smem constant byte address 0x4 - core index']
  #allocation1 [shape = 'u32[144,128]{1,0:T(1,128)}', space=vmem, size = 0x12000, scoped, tag = 'internal scratch']
  %s0 = inlined_call_operand.hbm [shape: bf16[4,16,128], index: 0, kind: input, shape index: {}]
  %s1 = inlined_call_operand.hbm [shape: bf16[4,24,128], index: 1, kind: input, shape index: {}]
  %s2 = inlined_call_operand.hbm [shape: bf16[4,16,24], index: 2, kind: input, shape index: {}]
  %s3 = inlined_call_operand.hbm [shape: bf16[4,24,24], index: 3, kind: input, shape index: {}]
  %s4 = inlined_call_operand.hbm [shape: bf16[13,128,128], index: 4, kind: input, shape index: {}]
  %s5 = inlined_call_operand.vmem [shape: f32[12,128], index: 5, kind: input, shape index: {}]
  %s6 = inlined_call_operand.hbm [shape: f32[4,1,128], index: 6, kind: output, shape index: {}]
  %s7 = sld [smem:[#allocation0]]
  $region77: #{tpu_custom_call.1} parent=0
    _
  %s9 = ssub.s32 1, %s7
  %s10 = scalar_select 0, %s9, %s7
  $region1: #{tpu_custom_call.1} parent=0
    #allocation2 [shape = 'u8[8192]{0}', space=vmem, size = 0x2000, scoped, tag = 'input window, operand 0']
    #allocation3 [shape = 's32[2]{0}', space=sflag, size = 0x8, scoped, tag = 'scoped memory for tpu_custom_call.1']
    #allocation4 [shape = 's32[2]{0}', space=sflag, size = 0x8, scoped, tag = 'scoped memory for tpu_custom_call.1']
    #allocation5 [shape = 'u8[12288]{0}', space=vmem, size = 0x3000, scoped, tag = 'input window, operand 1']
    #allocation6 [shape = 's32[2]{0}', space=sflag, size = 0x8, scoped, tag = 'scoped memory for tpu_custom_call.1']
    #allocation7 [shape = 'u8[8192]{0}', space=vmem, size = 0x2000, scoped, tag = 'input window, operand 2']
    #allocation8 [shape = 'u8[12288]{0}', space=vmem, size = 0x3000, scoped, tag = 'input window, operand 3']
    #allocation9 [shape = 's32[2]{0}', space=sflag, size = 0x8, scoped, tag = 'scoped memory for tpu_custom_call.1']
    #allocation10 [shape = 'u8[425984]{0}', space=vmem, size = 0x68000, scoped, tag = 'input window, operand 4, single buffered']
    #allocation11 [shape = 'u8[1024]{0}', space=vmem, size = 0x400, scoped, tag = 'output window, operand 0']
    %11 = vsyncpa [#allocation3], 0
    %s12 = scalar_lea.sflag [#allocation3], 1
    %13 = vsyncpa %s12, 0
    %14 = vsyncpa [#allocation6], 0
    %s15 = scalar_lea.sflag [#allocation6], 1
    %16 = vsyncpa %s15, 0
    %17 = vsyncpa [#allocation9], 0
    %s18 = scalar_lea.sflag [#allocation9], 1
    %19 = vsyncpa %s18, 0
    %20 = vsyncpa [#allocation4], 0
    %s21 = scalar_lea.sflag [#allocation4], 1
    %22 = vsyncpa %s21, 0
    loop: start=0, step=1, limit=6
    $region2: #{tpu_custom_call.1} parent=1 // loop_pre_header
      _
    $region3: #{tpu_custom_call.1} parent=1 // loop_header
      %s24 = sphi 0, %s28
      %p25 = scmp.ge.s32.totalorder %s24, 6
      %s34 = sphi 0, %s36
      %s37 = sphi 0, %s34
      %s38 = sphi 0, %s37
      %s54 = sphi 0, %s38
      %s60 = sphi 0, %s62
      %s63 = sphi 0, %s60
      %s64 = sphi 0, %s63
      %s80 = sphi 0, %s64
      %s86 = sphi 0, %s88
      %s89 = sphi 0, %s86
      %s90 = sphi 0, %s89
      %s106 = sphi 0, %s90
      %s112 = sphi 0, %s114
      %s115 = sphi 0, %s112
      %s116 = sphi 0, %s115
      %s132 = sphi 0, %s116
      %s136 = sphi 0, %s136
      %s138 = sphi 0, %s136
      %s139 = sphi 0, %s138
      %s153 = sphi 0, %s139
      %s157 = sphi 0, %s157
      %s159 = sphi 0, %s157
      %s160 = sphi 0, %s159
      %s174 = sphi 0, %s160
      %s180 = sphi 0, %s182
      %s183 = sphi 0, %s180
      %s184 = sphi 0, %s183
      %s200 = sphi 0, %s184
    $region4: #{tpu_custom_call.1} parent=1 // loop_header_branch
      %27 = sbr.rel (%p25) target = $region8
    $region5: #{tpu_custom_call.1} parent=1 // loop_body
      %s29 = ssub.s32 %s24, 1
      %s30 = ssub.s32 %s24, 2
      %s31 = sadd.s32 %s24, 1
      %s32 = ssub.s32 %s24, %s31
      %p33 = scmp.eq.s32.totalorder %s32, 0
      %s35 = sadd.s32 %s34, 1
      %s36 = scalar_select %p33, %s34, %s35
      %p39 = pneg %p33
      %p40 = scmp.eq.s32.totalorder %s24, 3
      %p41 = por %p39, %p40
      %p42 = scmp.ne.s32.totalorder %s34, %s37
      %p43 = scmp.eq.s32.totalorder %s24, 0
      %p44 = por %p42, %p43
      %p45 = scmp.ne.s32.totalorder %s34, %s37
      %p46 = scmp.eq.s32.totalorder %s29, 3
      %p47 = por %p45, %p46
      %p48 = scmp.ne.s32.totalorder %s37, %s38
      %p49 = scmp.eq.s32.totalorder %s29, 0
      %p50 = por %p48, %p49
      %p51 = scmp.ne.s32.totalorder %s37, %s38
      %p52 = scmp.eq.s32.totalorder %s30, 3
      %p53 = por %p51, %p52
      %p55 = scmp.ne.s32.totalorder %s38, %s54
      %p56 = scmp.eq.s32.totalorder %s30, 0
      %p57 = por %p55, %p56
      %s58 = ssub.s32 %s24, %s31
      %p59 = scmp.eq.s32.totalorder %s58, 0
      %s61 = sadd.s32 %s60, 1
      %s62 = scalar_select %p59, %s60, %s61
      %p65 = pneg %p59
      %p66 = scmp.eq.s32.totalorder %s24, 3
      %p67 = por %p65, %p66
      %p68 = scmp.ne.s32.totalorder %s60, %s63
      %p69 = scmp.eq.s32.totalorder %s24, 0
      %p70 = por %p68, %p69
      %p71 = scmp.ne.s32.totalorder %s60, %s63
      %p72 = scmp.eq.s32.totalorder %s29, 3
      %p73 = por %p71, %p72
      %p74 = scmp.ne.s32.totalorder %s63, %s64
      %p75 = scmp.eq.s32.totalorder %s29, 0
      %p76 = por %p74, %p75
      %p77 = scmp.ne.s32.totalorder %s63, %s64
      %p78 = scmp.eq.s32.totalorder %s30, 3
      %p79 = por %p77, %p78
      %p81 = scmp.ne.s32.totalorder %s64, %s80
      %p82 = scmp.eq.s32.totalorder %s30, 0
      %p83 = por %p81, %p82
      %s84 = ssub.s32 %s24, %s31
      %p85 = scmp.eq.s32.totalorder %s84, 0
      %s87 = sadd.s32 %s86, 1
      %s88 = scalar_select %p85, %s86, %s87
      %p91 = pneg %p85
      %p92 = scmp.eq.s32.totalorder %s24, 3
      %p93 = por %p91, %p92
      %p94 = scmp.ne.s32.totalorder %s86, %s89
      %p95 = scmp.eq.s32.totalorder %s24, 0
      %p96 = por %p94, %p95
      %p97 = scmp.ne.s32.totalorder %s86, %s89
      %p98 = scmp.eq.s32.totalorder %s29, 3
      %p99 = por %p97, %p98
      %p100 = scmp.ne.s32.totalorder %s89, %s90
      %p101 = scmp.eq.s32.totalorder %s29, 0
      %p102 = por %p100, %p101
      %p103 = scmp.ne.s32.totalorder %s89, %s90
      %p104 = scmp.eq.s32.totalorder %s30, 3
      %p105 = por %p103, %p104
      %p107 = scmp.ne.s32.totalorder %s90, %s106
      %p108 = scmp.eq.s32.totalorder %s30, 0
      %p109 = por %p107, %p108
      %s110 = ssub.s32 %s24, %s31
      %p111 = scmp.eq.s32.totalorder %s110, 0
      %s113 = sadd.s32 %s112, 1
      %s114 = scalar_select %p111, %s112, %s113
      %p117 = pneg %p111
      %p118 = scmp.eq.s32.totalorder %s24, 3
      %p119 = por %p117, %p118
      %p120 = scmp.ne.s32.totalorder %s112, %s115
      %p121 = scmp.eq.s32.totalorder %s24, 0
      %p122 = por %p120, %p121
      %p123 = scmp.ne.s32.totalorder %s112, %s115
      %p124 = scmp.eq.s32.totalorder %s29, 3
      %p125 = por %p123, %p124
      %p126 = scmp.ne.s32.totalorder %s115, %s116
      %p127 = scmp.eq.s32.totalorder %s29, 0
      %p128 = por %p126, %p127
      %p129 = scmp.ne.s32.totalorder %s115, %s116
      %p130 = scmp.eq.s32.totalorder %s30, 3
      %p131 = por %p129, %p130
      %p133 = scmp.ne.s32.totalorder %s116, %s132
      %p134 = scmp.eq.s32.totalorder %s30, 0
      %p135 = por %p133, %p134
      %s137 = sadd.s32 %s136, 1
      %p140 = scmp.eq.s32.totalorder %s24, 3
      %p141 = scmp.ne.s32.totalorder %s136, %s138
      %p142 = scmp.eq.s32.totalorder %s24, 0
      %p143 = por %p141, %p142
      %p144 = scmp.ne.s32.totalorder %s136, %s138
      %p145 = scmp.eq.s32.totalorder %s29, 3
      %p146 = por %p144, %p145
      %p147 = scmp.ne.s32.totalorder %s138, %s139
      %p148 = scmp.eq.s32.totalorder %s29, 0
      %p149 = por %p147, %p148
      %p150 = scmp.ne.s32.totalorder %s138, %s139
      %p151 = scmp.eq.s32.totalorder %s30, 3
      %p152 = por %p150, %p151
      %p154 = scmp.ne.s32.totalorder %s139, %s153
      %p155 = scmp.eq.s32.totalorder %s30, 0
      %p156 = por %p154, %p155
      %s158 = sadd.s32 %s157, 1
      %p161 = scmp.eq.s32.totalorder %s24, 3
      %p162 = scmp.ne.s32.totalorder %s157, %s159
      %p163 = scmp.eq.s32.totalorder %s24, 0
      %p164 = por %p162, %p163
      %p165 = scmp.ne.s32.totalorder %s157, %s159
      %p166 = scmp.eq.s32.totalorder %s29, 3
      %p167 = por %p165, %p166
      %p168 = scmp.ne.s32.totalorder %s159, %s160
      %p169 = scmp.eq.s32.totalorder %s29, 0
      %p170 = por %p168, %p169
      %p171 = scmp.ne.s32.totalorder %s159, %s160
      %p172 = scmp.eq.s32.totalorder %s30, 3
      %p173 = por %p171, %p172
      %p175 = scmp.ne.s32.totalorder %s160, %s174
      %p176 = scmp.eq.s32.totalorder %s30, 0
      %p177 = por %p175, %p176
      %s178 = ssub.s32 %s24, %s31
      %p179 = scmp.eq.s32.totalorder %s178, 0
      %s181 = sadd.s32 %s180, 1
      %s182 = scalar_select %p179, %s180, %s181
      %p185 = pneg %p179
      %p186 = scmp.eq.s32.totalorder %s24, 3
      %p187 = por %p185, %p186
      %p188 = scmp.ne.s32.totalorder %s180, %s183
      %p189 = scmp.eq.s32.totalorder %s24, 0
      %p190 = por %p188, %p189
      %p191 = scmp.ne.s32.totalorder %s180, %s183
      %p192 = scmp.eq.s32.totalorder %s29, 3
      %p193 = por %p191, %p192
      %p194 = scmp.ne.s32.totalorder %s183, %s184
      %p195 = scmp.eq.s32.totalorder %s29, 0
      %p196 = por %p194, %p195
      %p197 = scmp.ne.s32.totalorder %s183, %s184
      %p198 = scmp.eq.s32.totalorder %s30, 3
      %p199 = por %p197, %p198
      %p201 = scmp.ne.s32.totalorder %s184, %s200
      %p202 = scmp.eq.s32.totalorder %s30, 0
      %p203 = por %p201, %p202
      %p204 = scmp.le.s32.totalorder 1, %s24
      %p205 = scmp.lt.s32.totalorder %s24, 5
      %p206 = pnand %p204, %p205
      %p207 = pneg %p206
      // Predicated region
      $region9: #{tpu_custom_call.1} parent=5 // pred_check
        _
      $region10: #{tpu_custom_call.1} parent=5 // pred_check_branch
        %209 = sbr.rel (%p206) target = $region12
      $region11: #{tpu_custom_call.1} parent=5 // pred_region
        %s210 = ssub.s32 %s24, 1
        // Predicated region
        $region13: #{tpu_custom_call.1} parent=11 // pred_check
          %p211 = pneg %p149
        $region14: #{tpu_custom_call.1} parent=11 // pred_check_branch
          %213 = sbr.rel (%p211) target = $region16
        $region15: #{tpu_custom_call.1} parent=11 // pred_region
          %s215 = ssub.s32 13312, 13312
          %216 = vsyncadd [#allocation9], %s215
          %s217 = sshll.u32 [#allocation10], 4
          %s218 = int_to_ptr.vmem [resolvable:$true] %s217
          %223 = dma.hbm_to_vmem [thread:$0]  %s4, 13312, %s218, [#allocation9], 64, 64, 4
        $region16: #{tpu_custom_call.1} parent=11 // pred_fallthru
          _
        // Predicated region
        $region17: #{tpu_custom_call.1} parent=11 // pred_check
          %p224 = pneg %p170
        $region18: #{tpu_custom_call.1} parent=11 // pred_check_branch
          %226 = sbr.rel (%p224) target = $region20
        $region19: #{tpu_custom_call.1} parent=11 // pred_region
          _
        $region20: #{tpu_custom_call.1} parent=11 // pred_fallthru
          _
      $region12: #{tpu_custom_call.1} parent=5 // pred_fallthru
        _
      %p227 = scmp.lt.s32.totalorder %s24, 4
      // Predicated region
      $region21: #{tpu_custom_call.1} parent=5 // pred_check
        %p228 = pneg %p227
      $region22: #{tpu_custom_call.1} parent=5 // pred_check_branch
        %230 = sbr.rel (%p228) target = $region24
      $region23: #{tpu_custom_call.1} parent=5 // pred_region
        // Predicated region
        $region25: #{tpu_custom_call.1} parent=23 // pred_check
          %p231 = pneg %p44
        $region26: #{tpu_custom_call.1} parent=23 // pred_check_branch
          %233 = sbr.rel (%p231) target = $region28
        $region27: #{tpu_custom_call.1} parent=23 // pred_region
          %s234 = sand.u32 %s34, 1
          %s235 = scalar_lea.sflag [#allocation3], %s234
          %s236 = sand.u32 %s34, 1
          %s237 = smul.addr %s236, 8
          %s238 = scalar_lea.vmem [#allocation2], %s237
          %s240 = ssub.s32 128, 128
          %241 = vsyncadd %s235, %s240
          %s242 = smul.addr %s24, 2
          %s243 = smul.addr %s242, 64
          %s244 = scalar_lea.hbm %s0, %s243
          %s245 = sshll.u32 %s238, 4
          %s246 = int_to_ptr.vmem [resolvable:$true] %s245
          %251 = dma.hbm_to_vmem [thread:$0]  %s244, 128, %s246, %s235, 64, 64, 4
        $region28: #{tpu_custom_call.1} parent=23 // pred_fallthru
          _
        // Predicated region
        $region29: #{tpu_custom_call.1} parent=23 // pred_check
          %p252 = pneg %p70
        $region30: #{tpu_custom_call.1} parent=23 // pred_check_branch
          %254 = sbr.rel (%p252) target = $region32
        $region31: #{tpu_custom_call.1} parent=23 // pred_region
          %s255 = sand.u32 %s24, 1
          %s256 = scalar_lea.sflag [#allocation6], %s255
          %s257 = sand.u32 %s60, 1
          %s258 = smul.addr %s257, 12
          %s259 = scalar_lea.vmem [#allocation5], %s258
          %s261 = ssub.s32 192, 192
          %262 = vsyncadd %s256, %s261
          %s263 = smul.addr %s24, 3
          %s264 = smul.addr %s263, 64
          %s265 = scalar_lea.hbm %s1, %s264
          %s266 = sshll.u32 %s259, 4
          %s267 = int_to_ptr.vmem [resolvable:$true] %s266
          %272 = dma.hbm_to_vmem [thread:$0]  %s265, 192, %s267, %s256, 64, 64, 4
        $region32: #{tpu_custom_call.1} parent=23 // pred_fallthru
          _
        // Predicated region
        $region33: #{tpu_custom_call.1} parent=23 // pred_check
          %p273 = pneg %p96
        $region34: #{tpu_custom_call.1} parent=23 // pred_check_branch
          %275 = sbr.rel (%p273) target = $region36
        $region35: #{tpu_custom_call.1} parent=23 // pred_region
          %s276 = sand.u32 %s24, 1
          %s277 = scalar_lea.sflag [#allocation6], %s276
          %s278 = sand.u32 %s86, 1
          %s279 = smul.addr %s278, 8
          %s280 = scalar_lea.vmem [#allocation7], %s279
          %s282 = ssub.s32 128, 128
          %283 = vsyncadd %s277, %s282
          %s284 = smul.addr %s24, 2
          %s285 = smul.addr %s284, 64
          %s286 = scalar_lea.hbm %s2, %s285
          %s287 = sshll.u32 %s280, 4
          %s288 = int_to_ptr.vmem [resolvable:$true] %s287
          %293 = dma.hbm_to_vmem [thread:$0]  %s286, 128, %s288, %s277, 64, 64, 4
        $region36: #{tpu_custom_call.1} parent=23 // pred_fallthru
          _
        // Predicated region
        $region37: #{tpu_custom_call.1} parent=23 // pred_check
          %p294 = pneg %p122
        $region38: #{tpu_custom_call.1} parent=23 // pred_check_branch
          %296 = sbr.rel (%p294) target = $region40
        $region39: #{tpu_custom_call.1} parent=23 // pred_region
          %s297 = sand.u32 %s24, 1
          %s298 = scalar_lea.sflag [#allocation9], %s297
          %s299 = sand.u32 %s112, 1
          %s300 = smul.addr %s299, 12
          %s301 = scalar_lea.vmem [#allocation8], %s300
          %s303 = ssub.s32 192, 192
          %304 = vsyncadd %s298, %s303
          %s305 = smul.addr %s24, 3
          %s306 = smul.addr %s305, 64
          %s307 = scalar_lea.hbm %s3, %s306
          %s308 = sshll.u32 %s301, 4
          %s309 = int_to_ptr.vmem [resolvable:$true] %s308
          %314 = dma.hbm_to_vmem [thread:$0]  %s307, 192, %s309, %s298, 64, 64, 4
        $region40: #{tpu_custom_call.1} parent=23 // pred_fallthru
          _
      $region24: #{tpu_custom_call.1} parent=5 // pred_fallthru
        _
      %p315 = scmp.le.s32.totalorder 1, %s24
      %p316 = scmp.lt.s32.totalorder %s24, 5
      %p317 = pnand %p315, %p316
      %p318 = pneg %p317
      // Predicated region
      $region41: #{tpu_custom_call.1} parent=5 // pred_check
        _
      $region42: #{tpu_custom_call.1} parent=5 // pred_check_branch
        %320 = sbr.rel (%p317) target = $region44
      $region43: #{tpu_custom_call.1} parent=5 // pred_region
        %s321 = ssub.s32 %s24, 1
        %s322 = sand.u32 %s37, 1
        %s323 = scalar_lea.sflag [#allocation3], %s322
        %s324 = sand.u32 %s37, 1
        %s325 = smul.addr %s324, 8
        %s326 = scalar_lea.vmem [#allocation2], %s325
        // Predicated region
        $region45: #{tpu_custom_call.1} parent=43 // pred_check
          %p327 = pneg %p50
        $region46: #{tpu_custom_call.1} parent=43 // pred_check_branch
          %329 = sbr.rel (%p327) target = $region48
        $region47: #{tpu_custom_call.1} parent=43 // pred_region
          %330 = dma.done %s323, 128
        $region48: #{tpu_custom_call.1} parent=43 // pred_fallthru
          _
        %s331 = sand.u32 %s29, 1
        %s332 = scalar_lea.sflag [#allocation6], %s331
        %s333 = sand.u32 %s63, 1
        %s334 = smul.addr %s333, 12
        %s335 = scalar_lea.vmem [#allocation5], %s334
        // Predicated region
        $region49: #{tpu_custom_call.1} parent=43 // pred_check
          %p336 = pneg %p76
        $region50: #{tpu_custom_call.1} parent=43 // pred_check_branch
          %338 = sbr.rel (%p336) target = $region52
        $region51: #{tpu_custom_call.1} parent=43 // pred_region
          %339 = dma.done %s332, 192
        $region52: #{tpu_custom_call.1} parent=43 // pred_fallthru
          _
        %s340 = sand.u32 %s29, 1
        %s341 = scalar_lea.sflag [#allocation6], %s340
        %s342 = sand.u32 %s89, 1
        %s343 = smul.addr %s342, 8
        %s344 = scalar_lea.vmem [#allocation7], %s343
        // Predicated region
        $region53: #{tpu_custom_call.1} parent=43 // pred_check
          %p345 = pneg %p102
        $region54: #{tpu_custom_call.1} parent=43 // pred_check_branch
          %347 = sbr.rel (%p345) target = $region56
        $region55: #{tpu_custom_call.1} parent=43 // pred_region
          %348 = dma.done %s341, 128
        $region56: #{tpu_custom_call.1} parent=43 // pred_fallthru
          _
        %s349 = sand.u32 %s29, 1
        %s350 = scalar_lea.sflag [#allocation9], %s349
        %s351 = sand.u32 %s115, 1
        %s352 = smul.addr %s351, 12
        %s353 = scalar_lea.vmem [#allocation8], %s352
        // Predicated region
        $region57: #{tpu_custom_call.1} parent=43 // pred_check
          %p354 = pneg %p128
        $region58: #{tpu_custom_call.1} parent=43 // pred_check_branch
          %356 = sbr.rel (%p354) target = $region60
        $region59: #{tpu_custom_call.1} parent=43 // pred_region
          %357 = dma.done %s350, 192
        $region60: #{tpu_custom_call.1} parent=43 // pred_fallthru
          _
        // Predicated region
        $region61: #{tpu_custom_call.1} parent=43 // pred_check
          %p358 = pneg %p149
        $region62: #{tpu_custom_call.1} parent=43 // pred_check_branch
          %360 = sbr.rel (%p358) target = $region64
        $region63: #{tpu_custom_call.1} parent=43 // pred_region
          %361 = dma.done [#allocation9], 13312
        $region64: #{tpu_custom_call.1} parent=43 // pred_fallthru
          _
        %s362 = sand.u32 %s37, 1
        %s363 = scalar_lea.sflag [#allocation3], %s362
        %s364 = sand.u32 %s37, 1
        %s365 = smul.addr %s364, 8
        %s366 = scalar_lea.vmem [#allocation2], %s365
        %p367 = pneg %p50
        %p368 = pneg %p47
        %s369 = sand.u32 %s29, 1
        %s370 = scalar_lea.sflag [#allocation6], %s369
        %s371 = sand.u32 %s63, 1
        %s372 = smul.addr %s371, 12
        %s373 = scalar_lea.vmem [#allocation5], %s372
        %p374 = pneg %p76
        %p375 = pneg %p73
        %s376 = sand.u32 %s29, 1
        %s377 = scalar_lea.sflag [#allocation6], %s376
        %s378 = sand.u32 %s89, 1
        %s379 = smul.addr %s378, 8
        %s380 = scalar_lea.vmem [#allocation7], %s379
        %p381 = pneg %p102
        %p382 = pneg %p99
        %s383 = sand.u32 %s29, 1
        %s384 = scalar_lea.sflag [#allocation9], %s383
        %s385 = sand.u32 %s115, 1
        %s386 = smul.addr %s385, 12
        %s387 = scalar_lea.vmem [#allocation8], %s386
        %p388 = pneg %p128
        %p389 = pneg %p125
        %p390 = pneg %p149
        %p391 = pneg %p146
        %p392 = pneg %p170
        %p393 = pneg %p167
        %p394 = pneg %p196
        %p395 = pneg %p193
        %s396 = sand.u32 %s183, 1
        %s397 = scalar_lea.sflag [#allocation4], %s396
        %s398 = sand.u32 %s183, 1
        %s399 = scalar_lea.vmem [#allocation11], %s398
        %v401 = vld [vmem:[%s326] sm:$0xf]
        %v402 = vld [vmem:[%s326 + $0x4] sm:$0xf]
        %v403 = vld [vmem:[#allocation10] sm:$0xf]
        %v404 = vld [vmem:[#allocation10 + $0x4] sm:$0xf]
        %v405 = vld [vmem:[#allocation10 + $0x8] sm:$0xf]
        %v406 = vld [vmem:[#allocation10 + $0xc] sm:$0xf]
        %v407 = vld [vmem:[#allocation10 + $0x10] sm:$0xf]
        %v408 = vld [vmem:[#allocation10 + $0x14] sm:$0xf]
        %v409 = vld [vmem:[#allocation10 + $0x18] sm:$0xf]
        %v410 = vld [vmem:[#allocation10 + $0x1c] sm:$0xf]
        %v411 = vld [vmem:[#allocation10 + $0x20] sm:$0xf]
        %v412 = vld [vmem:[#allocation10 + $0x24] sm:$0xf]
        %v413 = vld [vmem:[#allocation10 + $0x28] sm:$0xf]
        %v414 = vld [vmem:[#allocation10 + $0x2c] sm:$0xf]
        %v415 = vld [vmem:[#allocation10 + $0x30] sm:$0xf]
        %v416 = vld [vmem:[#allocation10 + $0x34] sm:$0xf]
        %v417 = vld [vmem:[#allocation10 + $0x38] sm:$0xf]
        %v418 = vld [vmem:[#allocation10 + $0x3c] sm:$0xf]
        %v419 = vld [vmem:[%s5] sm:$0x1]
        %v420 = vlaneseq
        %v421 = vshrl.u32 %v420, 7
        %v422 = vsub.s32 0, %v421
        %v423 = vrot.slane %v419, %v422
        %v426 = vunpack.c.l.b16 %v401
        %v427 = vunpack.c.l.b16 %v402
        %v428 = vpack.c.b16 %v427, %v426
        %v446 = vunpack.c.l.b16 %v403
        %v447 = vunpack.c.l.b16 %v404
        %v448 = vunpack.c.l.b16 %v405
        %v449 = vunpack.c.l.b16 %v406
        %v450 = vunpack.c.l.b16 %v407
        %v451 = vunpack.c.l.b16 %v408
        %v452 = vunpack.c.l.b16 %v409
        %v453 = vunpack.c.l.b16 %v410
        %v454 = vunpack.c.l.b16 %v411
        %v455 = vunpack.c.l.b16 %v412
        %v456 = vunpack.c.l.b16 %v413
        %v457 = vunpack.c.l.b16 %v414
        %v458 = vunpack.c.l.b16 %v415
        %v459 = vunpack.c.l.b16 %v416
        %v460 = vunpack.c.l.b16 %v417
        %v461 = vunpack.c.l.b16 %v418
        %v462 = vpack.c.b16 %v447, %v446
        %v463 = vpack.c.b16 %v449, %v448
        %v464 = vpack.c.b16 %v451, %v450
        %v465 = vpack.c.b16 %v453, %v452
        %v466 = vpack.c.b16 %v455, %v454
        %v467 = vpack.c.b16 %v457, %v456
        %v468 = vpack.c.b16 %v459, %v458
        %v469 = vpack.c.b16 %v461, %v460
        %478 = vmatprep.subr.bf16.mxu0 0
        %479 = vmatpush1.bf16.msra.mxu0 %v462
        %480 = vmatprep.subr.bf16.mxu0 0
        %481 = vmatpush1.bf16.msra.mxu0 %v463
        %482 = vmatprep.subr.bf16.mxu0 0
        %483 = vmatpush1.bf16.msra.mxu0 %v464
        %484 = vmatprep.subr.bf16.mxu0 0
        %485 = vmatpush1.bf16.msra.mxu0 %v465
        %486 = vmatprep.subr.bf16.mxu0 0
        %487 = vmatpush1.bf16.msra.mxu0 %v466
        %488 = vmatprep.subr.bf16.mxu0 0
        %489 = vmatpush1.bf16.msra.mxu0 %v467
        %490 = vmatprep.subr.bf16.mxu0 0
        %491 = vmatpush1.bf16.msra.mxu0 %v468
        %492 = vmatprep.subr.bf16.mxu0 0
        %493 = vmatpush1.bf16.msra.mxu0 %v469
        %494 = vmatprep.subr.bf16.mxu0 0
        %495 = vmatpush1.bf16.msra.mxu0 0
        %496 = vmatprep.subr.bf16.mxu0 0
        %497 = vmatpush1.bf16.msra.mxu0 0
        %498 = vmatprep.subr.bf16.mxu0 0
        %499 = vmatpush1.bf16.msra.mxu0 0
        %500 = vmatprep.subr.bf16.mxu0 0
        %501 = vmatpush1.bf16.msra.mxu0 0
        %502 = vmatprep.subr.bf16.mxu0 0
        %503 = vmatpush1.bf16.msra.mxu0 0
        %504 = vmatprep.subr.bf16.mxu0 0
        %505 = vmatpush1.bf16.msra.mxu0 0
        %506 = vmatprep.subr.bf16.mxu0 0
        %507 = vmatpush1.bf16.msra.mxu0 0
        %508 = vmatprep.subr.bf16.mxu0 0
        %509 = vmatpush1.bf16.msra.mxu0 0
        %510 = vmatprep.mubr.bf16.mxu0 0
        %511 = vmatmul.mubr.bf16.gmra.mrb[0].mxu0 %v428
        %v512 = vpop.f32.mrb[0].mxu0
        %v513 = vadd.f32 %v423, %v512
        %v514 = vpop.f32.mrb[0].mxu0
        %v515 = vpop.f32.mrb[0].mxu0
        %v516 = vadd.f32 %v423, %v515
        %v517 = vpop.f32.mrb[0].mxu0
        %518 = vdwg.mxu0
        %v519 = vmax.f32 %v513, 0.0
        %v520 = vmax.f32 %v516, 0.0
        %v521 = vpack.c.bf16 %v520, %v519
        %s522 = scalar_lea.vmem [#allocation10], 64
        %v523 = vld [vmem:[%s522] sm:$0xf]
        %v524 = vld [vmem:[%s522 + $0x4] sm:$0xf]
        %v525 = vld [vmem:[%s522 + $0x8] sm:$0xf]
        %v526 = vld [vmem:[%s522 + $0xc] sm:$0xf]
        %v527 = vld [vmem:[%s5 + $0x1] sm:$0x1]
        %v528 = vlaneseq
        %v529 = vshrl.u32 %v528, 7
        %v530 = vsub.s32 0, %v529
        %v531 = vrot.slane %v527, %v530
        %v536 = vunpack.c.l.b16 %v523
        %v537 = vunpack.c.l.b16 %v524
        %v538 = vunpack.c.l.b16 %v525
        %v539 = vunpack.c.l.b16 %v526
        %v540 = vpack.c.b16 %v537, %v536
        %v541 = vpack.c.b16 %v539, %v538
        %vm544 = vcmask 261120
        %v546 = vsel %vm544, %v521, 0
        %548 = vmatprep.subr.bf16.mxu0 0
        %549 = vmatpush1.bf16.msra.mxu0 %v540
        %550 = vmatprep.subr.bf16.mxu0 0
        %551 = vmatpush1.bf16.msra.mxu0 %v541
        %552 = vmatprep.subr.bf16.mxu0 0
        %553 = vmatpush1.bf16.msra.mxu0 0
        %554 = vmatprep.subr.bf16.mxu0 0
        %555 = vmatpush1.bf16.msra.mxu0 0
        %556 = vmatprep.subr.bf16.mxu0 0
        %557 = vmatpush1.bf16.msra.mxu0 0
        %558 = vmatprep.subr.bf16.mxu0 0
        %559 = vmatpush1.bf16.msra.mxu0 0
        %560 = vmatprep.subr.bf16.mxu0 0
        %561 = vmatpush1.bf16.msra.mxu0 0
        %562 = vmatprep.subr.bf16.mxu0 0
        %563 = vmatpush1.bf16.msra.mxu0 0
        %564 = vmatprep.subr.bf16.mxu0 0
        %565 = vmatpush1.bf16.msra.mxu0 0
        %566 = vmatprep.subr.bf16.mxu0 0
        %567 = vmatpush1.bf16.msra.mxu0 0
        %568 = vmatprep.subr.bf16.mxu0 0
        %569 = vmatpush1.bf16.msra.mxu0 0
        %570 = vmatprep.subr.bf16.mxu0 0
        %571 = vmatpush1.bf16.msra.mxu0 0
        %572 = vmatprep.subr.bf16.mxu0 0
        %573 = vmatpush1.bf16.msra.mxu0 0
        %574 = vmatprep.subr.bf16.mxu0 0
        %575 = vmatpush1.bf16.msra.mxu0 0
        %576 = vmatprep.subr.bf16.mxu0 0
        %577 = vmatpush1.bf16.msra.mxu0 0
        %578 = vmatprep.subr.bf16.mxu0 0
        %579 = vmatpush1.bf16.msra.mxu0 0
        %580 = vmatprep.mubr.bf16.mxu0 0
        %581 = vmatmul.mubr.bf16.gmra.mrb[0].mxu0 %v546
        %v582 = vpop.f32.mrb[0].mxu0
        %v583 = vadd.f32 %v531, %v582
        %v584 = vpop.f32.mrb[0].mxu0
        %v585 = vpop.f32.mrb[0].mxu0
        %v586 = vadd.f32 %v531, %v585
        %v587 = vpop.f32.mrb[0].mxu0
        %588 = vdwg.mxu0
        %v589 = vmax.f32 %v583, 0.0
        %v590 = vmax.f32 %v586, 0.0
        %v591 = vld [vmem:[%s335] sm:$0xf]
        %v592 = vld [vmem:[%s335 + $0x4] sm:$0xf]
        %v593 = vld [vmem:[%s335 + $0x8] sm:$0xf]
        %s594 = scalar_lea.vmem [#allocation10], 128
        %v595 = vld [vmem:[%s594] sm:$0xf]
        %v596 = vld [vmem:[%s594 + $0x4] sm:$0xf]
        %v597 = vld [vmem:[%s594 + $0x8] sm:$0xf]
        %v598 = vld [vmem:[%s594 + $0xc] sm:$0xf]
        %v599 = vld [vmem:[%s594 + $0x10] sm:$0xf]
        %v600 = vld [vmem:[%s594 + $0x14] sm:$0xf]
        %v601 = vld [vmem:[%s594 + $0x18] sm:$0xf]
        %v602 = vld [vmem:[%s594 + $0x1c] sm:$0xf]
        %v603 = vld [vmem:[%s594 + $0x20] sm:$0xf]
        %v604 = vld [vmem:[%s594 + $0x24] sm:$0xf]
        %v605 = vld [vmem:[%s594 + $0x28] sm:$0xf]
        %v606 = vld [vmem:[%s594 + $0x2c] sm:$0xf]
        %v607 = vld [vmem:[%s594 + $0x30] sm:$0xf]
        %v608 = vld [vmem:[%s594 + $0x34] sm:$0xf]
        %v609 = vld [vmem:[%s594 + $0x38] sm:$0xf]
        %v610 = vld [vmem:[%s594 + $0x3c] sm:$0xf]
        %v611 = vld [vmem:[%s5 + $0x2] sm:$0x1]
        %v612 = vlaneseq
        %v613 = vshrl.u32 %v612, 7
        %v614 = vsub.s32 0, %v613
        %v615 = vrot.slane %v611, %v614
        %v619 = vunpack.c.l.b16 %v591
        %v620 = vunpack.c.l.b16 %v592
        %v621 = vunpack.c.l.b16 %v593
        %v622 = vpack.c.b16 %v620, %v619
        %v623 = vpack.c.b16 %v621, %v621
        %v642 = vunpack.c.l.b16 %v595
        %v643 = vunpack.c.l.b16 %v596
        %v644 = vunpack.c.l.b16 %v597
        %v645 = vunpack.c.l.b16 %v598
        %v646 = vunpack.c.l.b16 %v599
        %v647 = vunpack.c.l.b16 %v600
        %v648 = vunpack.c.l.b16 %v601
        %v649 = vunpack.c.l.b16 %v602
        %v650 = vunpack.c.l.b16 %v603
        %v651 = vunpack.c.l.b16 %v604
        %v652 = vunpack.c.l.b16 %v605
        %v653 = vunpack.c.l.b16 %v606
        %v654 = vunpack.c.l.b16 %v607
        %v655 = vunpack.c.l.b16 %v608
        %v656 = vunpack.c.l.b16 %v609
        %v657 = vunpack.c.l.b16 %v610
        %v658 = vpack.c.b16 %v643, %v642
        %v659 = vpack.c.b16 %v645, %v644
        %v660 = vpack.c.b16 %v647, %v646
        %v661 = vpack.c.b16 %v649, %v648
        %v662 = vpack.c.b16 %v651, %v650
        %v663 = vpack.c.b16 %v653, %v652
        %v664 = vpack.c.b16 %v655, %v654
        %v665 = vpack.c.b16 %v657, %v656
        %674 = vmatprep.subr.bf16.mxu0 0
        %675 = vmatpush1.bf16.msra.mxu0 %v658
        %676 = vmatprep.subr.bf16.mxu0 0
        %677 = vmatpush1.bf16.msra.mxu0 %v659
        %678 = vmatprep.subr.bf16.mxu0 0
        %679 = vmatpush1.bf16.msra.mxu0 %v660
        %680 = vmatprep.subr.bf16.mxu0 0
        %681 = vmatpush1.bf16.msra.mxu0 %v661
        %682 = vmatprep.subr.bf16.mxu0 0
        %683 = vmatpush1.bf16.msra.mxu0 %v662
        %684 = vmatprep.subr.bf16.mxu0 0
        %685 = vmatpush1.bf16.msra.mxu0 %v663
        %686 = vmatprep.subr.bf16.mxu0 0
        %687 = vmatpush1.bf16.msra.mxu0 %v664
        %688 = vmatprep.subr.bf16.mxu0 0
        %689 = vmatpush1.bf16.msra.mxu0 %v665
        %690 = vmatprep.subr.bf16.mxu0 0
        %691 = vmatpush1.bf16.msra.mxu0 0
        %692 = vmatprep.subr.bf16.mxu0 0
        %693 = vmatpush1.bf16.msra.mxu0 0
        %694 = vmatprep.subr.bf16.mxu0 0
        %695 = vmatpush1.bf16.msra.mxu0 0
        %696 = vmatprep.subr.bf16.mxu0 0
        %697 = vmatpush1.bf16.msra.mxu0 0
        %698 = vmatprep.subr.bf16.mxu0 0
        %699 = vmatpush1.bf16.msra.mxu0 0
        %700 = vmatprep.subr.bf16.mxu0 0
        %701 = vmatpush1.bf16.msra.mxu0 0
        %702 = vmatprep.subr.bf16.mxu0 0
        %703 = vmatpush1.bf16.msra.mxu0 0
        %704 = vmatprep.subr.bf16.mxu0 0
        %705 = vmatpush1.bf16.msra.mxu0 0
        %706 = vmatprep.mubr.bf16.mxu0 0
        %707 = vmatmul.mubr.bf16.gmra.mrb[0].mxu0 %v622
        %v708 = vpop.f32.mrb[0].mxu0
        %v709 = vadd.f32 %v615, %v708
        %v710 = vpop.f32.mrb[0].mxu0
        %v711 = vpop.f32.mrb[0].mxu0
        %v712 = vadd.f32 %v615, %v711
        %v713 = vpop.f32.mrb[0].mxu0
        %714 = vmatprep.mubr.bf16.mxu0 0
        %715 = vmatmul.mubr.bf16.gmra.mrb[0].mxu0 %v623
        %v716 = vpop.f32.mrb[0].mxu0
        %v717 = vadd.f32 %v615, %v716
        %v718 = vpop.f32.mrb[0].mxu0
        %v719 = vpop.f32.mrb[0].mxu0
        %v720 = vpop.f32.mrb[0].mxu0
        %721 = vdwg.mxu0
        %v722 = vmax.f32 %v709, 0.0
        %v723 = vmax.f32 %v712, 0.0
        %v724 = vmax.f32 %v717, 0.0
        %v725 = vpack.c.bf16 %v723, %v722
        %v726 = vpack.c.bf16 %v724, %v724
        %s727 = scalar_lea.vmem [#allocation10], 192
        %v728 = vld [vmem:[%s727] sm:$0xf]
        %v729 = vld [vmem:[%s727 + $0x4] sm:$0xf]
        %v730 = vld [vmem:[%s727 + $0x8] sm:$0xf]
        %v731 = vld [vmem:[%s727 + $0xc] sm:$0xf]
        %v732 = vld [vmem:[%s5 + $0x3] sm:$0x1]
        %v733 = vlaneseq
        %v734 = vshrl.u32 %v733, 7
        %v735 = vsub.s32 0, %v734
        %v736 = vrot.slane %v732, %v735
        %v741 = vunpack.c.l.b16 %v728
        %v742 = vunpack.c.l.b16 %v729
        %v743 = vunpack.c.l.b16 %v730
        %v744 = vunpack.c.l.b16 %v731
        %v745 = vpack.c.b16 %v742, %v741
        %v746 = vpack.c.b16 %v744, %v743
        %v750 = vsel %vm544, %v725, 0
        %v753 = vsel %vm544, %v726, 0
        %755 = vmatprep.subr.bf16.mxu0 0
        %756 = vmatpush1.bf16.msra.mxu0 %v745
        %757 = vmatprep.subr.bf16.mxu0 0
        %758 = vmatpush1.bf16.msra.mxu0 %v746
        %759 = vmatprep.subr.bf16.mxu0 0
        %760 = vmatpush1.bf16.msra.mxu0 0
        %761 = vmatprep.subr.bf16.mxu0 0
        %762 = vmatpush1.bf16.msra.mxu0 0
        %763 = vmatprep.subr.bf16.mxu0 0
        %764 = vmatpush1.bf16.msra.mxu0 0
        %765 = vmatprep.subr.bf16.mxu0 0
        %766 = vmatpush1.bf16.msra.mxu0 0
        %767 = vmatprep.subr.bf16.mxu0 0
        %768 = vmatpush1.bf16.msra.mxu0 0
        %769 = vmatprep.subr.bf16.mxu0 0
        %770 = vmatpush1.bf16.msra.mxu0 0
        %771 = vmatprep.subr.bf16.mxu0 0
        %772 = vmatpush1.bf16.msra.mxu0 0
        %773 = vmatprep.subr.bf16.mxu0 0
        %774 = vmatpush1.bf16.msra.mxu0 0
        %775 = vmatprep.subr.bf16.mxu0 0
        %776 = vmatpush1.bf16.msra.mxu0 0
        %777 = vmatprep.subr.bf16.mxu0 0
        %778 = vmatpush1.bf16.msra.mxu0 0
        %779 = vmatprep.subr.bf16.mxu0 0
        %780 = vmatpush1.bf16.msra.mxu0 0
        %781 = vmatprep.subr.bf16.mxu0 0
        %782 = vmatpush1.bf16.msra.mxu0 0
        %783 = vmatprep.subr.bf16.mxu0 0
        %784 = vmatpush1.bf16.msra.mxu0 0
        %785 = vmatprep.subr.bf16.mxu0 0
        %786 = vmatpush1.bf16.msra.mxu0 0
        %787 = vmatprep.mubr.bf16.mxu0 0
        %788 = vmatmul.mubr.bf16.gmra.mrb[0].mxu0 %v750
        %v789 = vpop.f32.mrb[0].mxu0
        %v790 = vadd.f32 %v736, %v789
        %v791 = vpop.f32.mrb[0].mxu0
        %v792 = vpop.f32.mrb[0].mxu0
        %v793 = vadd.f32 %v736, %v792
        %v794 = vpop.f32.mrb[0].mxu0
        %795 = vmatprep.mubr.bf16.mxu0 0
        %796 = vmatmul.mubr.bf16.gmra.mrb[0].mxu0 %v753
        %v797 = vpop.f32.mrb[0].mxu0
        %v798 = vadd.f32 %v736, %v797
        %v799 = vpop.f32.mrb[0].mxu0
        %v800 = vpop.f32.mrb[0].mxu0
        %v801 = vpop.f32.mrb[0].mxu0
        %802 = vdwg.mxu0
        %v803 = vmax.f32 %v790, 0.0
        %v804 = vmax.f32 %v793, 0.0
        %v805 = vmax.f32 %v798, 0.0
        %v806 = vld [vmem:[%s344] sm:$0xf]
        %v807 = vld [vmem:[%s344 + $0x4] sm:$0xf]
        %v808 = vpack.c.bf16 %v590, %v589
        %s809 = scalar_lea.vmem [#allocation10], 256
        %v810 = vld [vmem:[%s809] sm:$0xf]
        %v811 = vld [vmem:[%s809 + $0x4] sm:$0xf]
        %v812 = vld [vmem:[%s809 + $0x8] sm:$0xf]
        %v813 = vld [vmem:[%s809 + $0xc] sm:$0xf]
        %v818 = vunpack.c.l.b16 %v810
        %v819 = vunpack.c.l.b16 %v811
        %v820 = vunpack.c.l.b16 %v812
        %v821 = vunpack.c.l.b16 %v813
        %v822 = vpack.c.b16 %v819, %v818
        %v823 = vpack.c.b16 %v821, %v820
        %v827 = vsel %vm544, %v808, 0
        %829 = vmatprep.subr.bf16.mxu0 0
        %830 = vmatpush1.bf16.msra.mxu0 %v822
        %831 = vmatprep.subr.bf16.mxu0 0
        %832 = vmatpush1.bf16.msra.mxu0 %v823
        %833 = vmatprep.subr.bf16.mxu0 0
        %834 = vmatpush1.bf16.msra.mxu0 0
        %835 = vmatprep.subr.bf16.mxu0 0
        %836 = vmatpush1.bf16.msra.mxu0 0
        %837 = vmatprep.subr.bf16.mxu0 0
        %838 = vmatpush1.bf16.msra.mxu0 0
        %839 = vmatprep.subr.bf16.mxu0 0
        %840 = vmatpush1.bf16.msra.mxu0 0
        %841 = vmatprep.subr.bf16.mxu0 0
        %842 = vmatpush1.bf16.msra.mxu0 0
        %843 = vmatprep.subr.bf16.mxu0 0
        %844 = vmatpush1.bf16.msra.mxu0 0
        %845 = vmatprep.subr.bf16.mxu0 0
        %846 = vmatpush1.bf16.msra.mxu0 0
        %847 = vmatprep.subr.bf16.mxu0 0
        %848 = vmatpush1.bf16.msra.mxu0 0
        %849 = vmatprep.subr.bf16.mxu0 0
        %850 = vmatpush1.bf16.msra.mxu0 0
        %851 = vmatprep.subr.bf16.mxu0 0
        %852 = vmatpush1.bf16.msra.mxu0 0
        %853 = vmatprep.subr.bf16.mxu0 0
        %854 = vmatpush1.bf16.msra.mxu0 0
        %855 = vmatprep.subr.bf16.mxu0 0
        %856 = vmatpush1.bf16.msra.mxu0 0
        %857 = vmatprep.subr.bf16.mxu0 0
        %858 = vmatpush1.bf16.msra.mxu0 0
        %859 = vmatprep.subr.bf16.mxu0 0
        %860 = vmatpush1.bf16.msra.mxu0 0
        %861 = vmatprep.mubr.bf16.mxu0 0
        %862 = vmatmul.mubr.bf16.gmra.mrb[0].mxu0 %v827
        %v863 = vpop.f32.mrb[0].mxu0
        %v864 = vadd.f32 0.0, %v863
        %v865 = vpop.f32.mrb[0].mxu0
        %v866 = vpop.f32.mrb[0].mxu0
        %v867 = vadd.f32 0.0, %v866
        %v868 = vpop.f32.mrb[0].mxu0
        %869 = vdwg.mxu0
        %v870 = vpack.c.bf16 %v804, %v803
        %v871 = vpack.c.bf16 %v805, %v805
        %s872 = scalar_lea.vmem [#allocation10], 320
        %v873 = vld [vmem:[%s872] sm:$0xf]
        %v874 = vld [vmem:[%s872 + $0x4] sm:$0xf]
        %v875 = vld [vmem:[%s872 + $0x8] sm:$0xf]
        %v876 = vld [vmem:[%s872 + $0xc] sm:$0xf]
        %v881 = vunpack.c.l.b16 %v873
        %v882 = vunpack.c.l.b16 %v874
        %v883 = vunpack.c.l.b16 %v875
        %v884 = vunpack.c.l.b16 %v876
        %v885 = vpack.c.b16 %v882, %v881
        %v886 = vpack.c.b16 %v884, %v883
        %v890 = vsel %vm544, %v870, 0
        %v893 = vsel %vm544, %v871, 0
        %895 = vmatprep.subr.bf16.mxu0 0
        %896 = vmatpush1.bf16.msra.mxu0 %v885
        %897 = vmatprep.subr.bf16.mxu0 0
        %898 = vmatpush1.bf16.msra.mxu0 %v886
        %899 = vmatprep.subr.bf16.mxu0 0
        %900 = vmatpush1.bf16.msra.mxu0 0
        %901 = vmatprep.subr.bf16.mxu0 0
        %902 = vmatpush1.bf16.msra.mxu0 0
        %903 = vmatprep.subr.bf16.mxu0 0
        %904 = vmatpush1.bf16.msra.mxu0 0
        %905 = vmatprep.subr.bf16.mxu0 0
        %906 = vmatpush1.bf16.msra.mxu0 0
        %907 = vmatprep.subr.bf16.mxu0 0
        %908 = vmatpush1.bf16.msra.mxu0 0
        %909 = vmatprep.subr.bf16.mxu0 0
        %910 = vmatpush1.bf16.msra.mxu0 0
        %911 = vmatprep.subr.bf16.mxu0 0
        %912 = vmatpush1.bf16.msra.mxu0 0
        %913 = vmatprep.subr.bf16.mxu0 0
        %914 = vmatpush1.bf16.msra.mxu0 0
        %915 = vmatprep.subr.bf16.mxu0 0
        %916 = vmatpush1.bf16.msra.mxu0 0
        %917 = vmatprep.subr.bf16.mxu0 0
        %918 = vmatpush1.bf16.msra.mxu0 0
        %919 = vmatprep.subr.bf16.mxu0 0
        %920 = vmatpush1.bf16.msra.mxu0 0
        %921 = vmatprep.subr.bf16.mxu0 0
        %922 = vmatpush1.bf16.msra.mxu0 0
        %923 = vmatprep.subr.bf16.mxu0 0
        %924 = vmatpush1.bf16.msra.mxu0 0
        %925 = vmatprep.subr.bf16.mxu0 0
        %926 = vmatpush1.bf16.msra.mxu0 0
        %927 = vmatprep.mubr.bf16.mxu0 0
        %928 = vmatmul.mubr.bf16.gmra.mrb[0].mxu0 %v890
        %v929 = vpop.f32.mrb[0].mxu0
        %v930 = vadd.f32 0.0, %v929
        %v931 = vpop.f32.mrb[0].mxu0
        %v932 = vpop.f32.mrb[0].mxu0
        %v933 = vadd.f32 0.0, %v932
        %v934 = vpop.f32.mrb[0].mxu0
        %935 = vmatprep.mubr.bf16.mxu0 0
        %936 = vmatmul.mubr.bf16.gmra.mrb[0].mxu0 %v893
        %v937 = vpop.f32.mrb[0].mxu0
        %v938 = vadd.f32 0.0, %v937
        %v939 = vpop.f32.mrb[0].mxu0
        %v940 = vpop.f32.mrb[0].mxu0
        %v941 = vpop.f32.mrb[0].mxu0
        %942 = vdwg.mxu0
        %v943 = vpack.c.bf16 %v867, %v864
        %v944 = vpack.c.bf16 %v933, %v930
        %v945 = vpack.c.bf16 %v938, %v938
        %v948 = vunpack.c.l.b16 %v806
        %v949 = vunpack.c.l.b16 %v807
        %v950 = vpack.c.b16 %v949, %v948
        %vm951 = vcmask 195584
        %v953 = vsel %vm951, %v950, 0
        %vm955 = vcmask 1043456
        %v957 = vsel %vm955, %v945, 0
        %959 = vmatprep.subr.bf16.mxu0 0
        %960 = vmatpush1.bf16.msra.mxu0 %v944
        %961 = vmatprep.subr.bf16.mxu0 0
        %962 = vmatpush1.bf16.msra.mxu0 %v957
        %963 = vmatprep.subr.bf16.mxu0 0
        %964 = vmatpush1.bf16.msra.mxu0 0
        %965 = vmatprep.subr.bf16.mxu0 0
        %966 = vmatpush1.bf16.msra.mxu0 0
        %967 = vmatprep.subr.bf16.mxu0 0
        %968 = vmatpush1.bf16.msra.mxu0 0
        %969 = vmatprep.subr.bf16.mxu0 0
        %970 = vmatpush1.bf16.msra.mxu0 0
        %971 = vmatprep.subr.bf16.mxu0 0
        %972 = vmatpush1.bf16.msra.mxu0 0
        %973 = vmatprep.subr.bf16.mxu0 0
        %974 = vmatpush1.bf16.msra.mxu0 0
        %975 = vmatprep.subr.bf16.mxu0 0
        %976 = vmatpush1.bf16.msra.mxu0 0
        %977 = vmatprep.subr.bf16.mxu0 0
        %978 = vmatpush1.bf16.msra.mxu0 0
        %979 = vmatprep.subr.bf16.mxu0 0
        %980 = vmatpush1.bf16.msra.mxu0 0
        %981 = vmatprep.subr.bf16.mxu0 0
        %982 = vmatpush1.bf16.msra.mxu0 0
        %983 = vmatprep.subr.bf16.mxu0 0
        %984 = vmatpush1.bf16.msra.mxu0 0
        %985 = vmatprep.subr.bf16.mxu0 0
        %986 = vmatpush1.bf16.msra.mxu0 0
        %987 = vmatprep.subr.bf16.mxu0 0
        %988 = vmatpush1.bf16.msra.mxu0 0
        %989 = vmatprep.subr.bf16.mxu0 0
        %990 = vmatpush1.bf16.msra.mxu0 0
        %991 = vmatprep.mubr.bf16.mxu0 0
        %992 = vmatmul.mubr.bf16.gmra.mrb[0].mxu0 %v953
        %v993 = vpop.f32.mrb[0].mxu0
        %v994 = vadd.f32 0.0, %v993
        %v995 = vpop.f32.mrb[0].mxu0
        %v996 = vpop.f32.mrb[0].mxu0
        %v997 = vadd.f32 0.0, %v996
        %v998 = vpop.f32.mrb[0].mxu0
        %999 = vdwg.mxu0
        %1001 = vxpose.xlu0.c.b16.start [1/8] %v950, 128
        %1002 = vxpose.xlu0.c.b16.cont [2/8] 0, 128
        %1003 = vxpose.xlu0.c.b16.cont [3/8] 0, 128
        %1004 = vxpose.xlu0.c.b16.cont [4/8] 0, 128
        %1005 = vxpose.xlu0.c.b16.cont [5/8] 0, 128
        %1006 = vxpose.xlu0.c.b16.cont [6/8] 0, 128
        %1007 = vxpose.xlu0.c.b16.cont [7/8] 0, 128
        %1008 = vxpose.xlu0.c.b16.end [8/8] 0, 128
        %v1009 = vpop.trf.xlu0
        %v1010 = vpop.trf.xlu0
        %v1011 = vpop.trf.xlu0
        %v1012 = vpop.trf.xlu0
        %v1013 = vpop.trf.xlu0
        %v1014 = vpop.trf.xlu0
        %v1015 = vpop.trf.xlu0
        %v1016 = vpop.trf.xlu0
        %vm1017 = vcmask 130048
        %v1019 = vsel %vm1017, %v1009, 0
        %v1022 = vsel %vm1017, %v1010, 0
        %1024 = vmatprep.subr.bf16.mxu0 0
        %1025 = vmatpush1.bf16.msra.mxu0 %v943
        %1026 = vmatprep.subr.bf16.mxu0 0
        %1027 = vmatpush1.bf16.msra.mxu0 0
        %1028 = vmatprep.subr.bf16.mxu0 0
        %1029 = vmatpush1.bf16.msra.mxu0 0
        %1030 = vmatprep.subr.bf16.mxu0 0
        %1031 = vmatpush1.bf16.msra.mxu0 0
        %1032 = vmatprep.subr.bf16.mxu0 0
        %1033 = vmatpush1.bf16.msra.mxu0 0
        %1034 = vmatprep.subr.bf16.mxu0 0
        %1035 = vmatpush1.bf16.msra.mxu0 0
        %1036 = vmatprep.subr.bf16.mxu0 0
        %1037 = vmatpush1.bf16.msra.mxu0 0
        %1038 = vmatprep.subr.bf16.mxu0 0
        %1039 = vmatpush1.bf16.msra.mxu0 0
        %1040 = vmatprep.subr.bf16.mxu0 0
        %1041 = vmatpush1.bf16.msra.mxu0 0
        %1042 = vmatprep.subr.bf16.mxu0 0
        %1043 = vmatpush1.bf16.msra.mxu0 0
        %1044 = vmatprep.subr.bf16.mxu0 0
        %1045 = vmatpush1.bf16.msra.mxu0 0
        %1046 = vmatprep.subr.bf16.mxu0 0
        %1047 = vmatpush1.bf16.msra.mxu0 0
        %1048 = vmatprep.subr.bf16.mxu0 0
        %1049 = vmatpush1.bf16.msra.mxu0 0
        %1050 = vmatprep.subr.bf16.mxu0 0
        %1051 = vmatpush1.bf16.msra.mxu0 0
        %1052 = vmatprep.subr.bf16.mxu0 0
        %1053 = vmatpush1.bf16.msra.mxu0 0
        %1054 = vmatprep.subr.bf16.mxu0 0
        %1055 = vmatpush1.bf16.msra.mxu0 0
        %1056 = vmatprep.mubr.bf16.mxu0 0
        %1057 = vmatmul.mubr.bf16.gmra.mrb[0].mxu0 %v1019
        %v1058 = vpop.f32.mrb[0].mxu0
        %v1059 = vadd.f32 0.0, %v1058
        %v1060 = vpop.f32.mrb[0].mxu0
        %v1061 = vpop.f32.mrb[0].mxu0
        %v1062 = vadd.f32 0.0, %v1061
        %v1063 = vpop.f32.mrb[0].mxu0
        %1064 = vmatprep.mubr.bf16.mxu0 0
        %1065 = vmatmul.mubr.bf16.gmra.mrb[0].mxu0 %v1022
        %v1066 = vpop.f32.mrb[0].mxu0
        %v1067 = vadd.f32 0.0, %v1066
        %v1068 = vpop.f32.mrb[0].mxu0
        %v1069 = vpop.f32.mrb[0].mxu0
        %v1070 = vpop.f32.mrb[0].mxu0
        %1071 = vdwg.mxu0
        %v1072 = vadd.f32 %v864, %v994
        %v1073 = vadd.f32 %v867, %v997
        %v1074 = vld [vmem:[%s5 + $0x4] sm:$0x1]
        %v1075 = vlaneseq
        %v1076 = vshrl.u32 %v1075, 7
        %v1077 = vsub.s32 0, %v1076
        %v1078 = vrot.slane %v1074, %v1077
        %v1079 = vadd.f32 %v1072, %v1078
        %v1080 = vadd.f32 %v1073, %v1078
        %v1081 = vadd.f32 %v930, %v1059
        %v1082 = vadd.f32 %v933, %v1062
        %v1083 = vadd.f32 %v938, %v1067
        %v1084 = vld [vmem:[%s5 + $0x5] sm:$0x1]
        %v1085 = vlaneseq
        %v1086 = vshrl.u32 %v1085, 7
        %v1087 = vsub.s32 0, %v1086
        %v1088 = vrot.slane %v1084, %v1087
        %1090 = vrot.lane.b32.xlu0 %v1088, 32
        %v1091 = vpop.permute.xlu0 %1090
        %v1093 = vadd.f32 %v1081, %v1091
        %v1094 = vadd.f32 %v1082, %v1091
        %v1095 = vadd.f32 %v1083, %v1091
        %v1096 = vld [vmem:[%s353] sm:$0xf]
        %v1097 = vld [vmem:[%s353 + $0x4] sm:$0xf]
        %v1098 = vld [vmem:[%s353 + $0x8] sm:$0xf]
        %v1102 = vunpack.c.l.b16 %v1096
        %v1103 = vunpack.c.l.b16 %v1097
        %v1104 = vunpack.c.l.b16 %v1098
        %v1105 = vpack.c.b16 %v1103, %v1102
        %v1106 = vpack.c.b16 %v1104, %v1104
        %v1108 = vsel %vm951, %v1105, 0
        %v1111 = vsel %vm951, %v1106, 0
        %1113 = vmatprep.subr.bf16.mxu0 0
        %1114 = vmatpush1.bf16.msra.mxu0 %v944
        %1115 = vmatprep.subr.bf16.mxu0 0
        %1116 = vmatpush1.bf16.msra.mxu0 %v957
        %1117 = vmatprep.subr.bf16.mxu0 0
        %1118 = vmatpush1.bf16.msra.mxu0 0
        %1119 = vmatprep.subr.bf16.mxu0 0
        %1120 = vmatpush1.bf16.msra.mxu0 0
        %1121 = vmatprep.subr.bf16.mxu0 0
        %1122 = vmatpush1.bf16.msra.mxu0 0
        %1123 = vmatprep.subr.bf16.mxu0 0
        %1124 = vmatpush1.bf16.msra.mxu0 0
        %1125 = vmatprep.subr.bf16.mxu0 0
        %1126 = vmatpush1.bf16.msra.mxu0 0
        %1127 = vmatprep.subr.bf16.mxu0 0
        %1128 = vmatpush1.bf16.msra.mxu0 0
        %1129 = vmatprep.subr.bf16.mxu0 0
        %1130 = vmatpush1.bf16.msra.mxu0 0
        %1131 = vmatprep.subr.bf16.mxu0 0
        %1132 = vmatpush1.bf16.msra.mxu0 0
        %1133 = vmatprep.subr.bf16.mxu0 0
        %1134 = vmatpush1.bf16.msra.mxu0 0
        %1135 = vmatprep.subr.bf16.mxu0 0
        %1136 = vmatpush1.bf16.msra.mxu0 0
        %1137 = vmatprep.subr.bf16.mxu0 0
        %1138 = vmatpush1.bf16.msra.mxu0 0
        %1139 = vmatprep.subr.bf16.mxu0 0
        %1140 = vmatpush1.bf16.msra.mxu0 0
        %1141 = vmatprep.subr.bf16.mxu0 0
        %1142 = vmatpush1.bf16.msra.mxu0 0
        %1143 = vmatprep.subr.bf16.mxu0 0
        %1144 = vmatpush1.bf16.msra.mxu0 0
        %1145 = vmatprep.mubr.bf16.mxu0 0
        %1146 = vmatmul.mubr.bf16.gmra.mrb[0].mxu0 %v1108
        %v1147 = vpop.f32.mrb[0].mxu0
        %v1148 = vadd.f32 0.0, %v1147
        %v1149 = vpop.f32.mrb[0].mxu0
        %v1150 = vpop.f32.mrb[0].mxu0
        %v1151 = vadd.f32 0.0, %v1150
        %v1152 = vpop.f32.mrb[0].mxu0
        %1153 = vmatprep.mubr.bf16.mxu0 0
        %1154 = vmatmul.mubr.bf16.gmra.mrb[0].mxu0 %v1111
        %v1155 = vpop.f32.mrb[0].mxu0
        %v1156 = vadd.f32 0.0, %v1155
        %v1157 = vpop.f32.mrb[0].mxu0
        %v1158 = vpop.f32.mrb[0].mxu0
        %v1159 = vpop.f32.mrb[0].mxu0
        %1160 = vdwg.mxu0
        %1164 = vrot.lane.b32.xlu0 %v1148, 96
        %v1165 = vpop.permute.xlu0 %1164
        %1166 = vrot.lane.b32.xlu0 %v1151, 96
        %v1167 = vpop.permute.xlu0 %1166
        %1168 = vrot.lane.b32.xlu0 %v1156, 96
        %v1169 = vpop.permute.xlu0 %1168
        %v1173 = vadd.f32 %v1093, %v1165
        %v1174 = vadd.f32 %v1094, %v1167
        %v1175 = vadd.f32 %v1095, %v1169
        %v1176 = vmax.f32 %v1079, 0.0
        %v1177 = vmax.f32 %v1080, 0.0
        %v1178 = vmax.f32 %v1173, 0.0
        %v1179 = vmax.f32 %v1174, 0.0
        %v1180 = vmax.f32 %v1175, 0.0
        %v1181 = vpack.c.bf16 %v1177, %v1176
        %s1182 = scalar_lea.vmem [#allocation10], 384
        %v1183 = vld [vmem:[%s1182] sm:$0xf]
        %v1184 = vld [vmem:[%s1182 + $0x4] sm:$0xf]
        %v1185 = vld [vmem:[%s1182 + $0x8] sm:$0xf]
        %v1186 = vld [vmem:[%s1182 + $0xc] sm:$0xf]
        %v1191 = vunpack.c.l.b16 %v1183
        %v1192 = vunpack.c.l.b16 %v1184
        %v1193 = vunpack.c.l.b16 %v1185
        %v1194 = vunpack.c.l.b16 %v1186
        %v1195 = vpack.c.b16 %v1192, %v1191
        %v1196 = vpack.c.b16 %v1194, %v1193
        %v1200 = vsel %vm544, %v1181, 0
        %1202 = vmatprep.subr.bf16.mxu0 0
        %1203 = vmatpush1.bf16.msra.mxu0 %v1195
        %1204 = vmatprep.subr.bf16.mxu0 0
        %1205 = vmatpush1.bf16.msra.mxu0 %v1196
        %1206 = vmatprep.subr.bf16.mxu0 0
        %1207 = vmatpush1.bf16.msra.mxu0 0
        %1208 = vmatprep.subr.bf16.mxu0 0
        %1209 = vmatpush1.bf16.msra.mxu0 0
        %1210 = vmatprep.subr.bf16.mxu0 0
        %1211 = vmatpush1.bf16.msra.mxu0 0
        %1212 = vmatprep.subr.bf16.mxu0 0
        %1213 = vmatpush1.bf16.msra.mxu0 0
        %1214 = vmatprep.subr.bf16.mxu0 0
        %1215 = vmatpush1.bf16.msra.mxu0 0
        %1216 = vmatprep.subr.bf16.mxu0 0
        %1217 = vmatpush1.bf16.msra.mxu0 0
        %1218 = vmatprep.subr.bf16.mxu0 0
        %1219 = vmatpush1.bf16.msra.mxu0 0
        %1220 = vmatprep.subr.bf16.mxu0 0
        %1221 = vmatpush1.bf16.msra.mxu0 0
        %1222 = vmatprep.subr.bf16.mxu0 0
        %1223 = vmatpush1.bf16.msra.mxu0 0
        %1224 = vmatprep.subr.bf16.mxu0 0
        %1225 = vmatpush1.bf16.msra.mxu0 0
        %1226 = vmatprep.subr.bf16.mxu0 0
        %1227 = vmatpush1.bf16.msra.mxu0 0
        %1228 = vmatprep.subr.bf16.mxu0 0
        %1229 = vmatpush1.bf16.msra.mxu0 0
        %1230 = vmatprep.subr.bf16.mxu0 0
        %1231 = vmatpush1.bf16.msra.mxu0 0
        %1232 = vmatprep.subr.bf16.mxu0 0
        %1233 = vmatpush1.bf16.msra.mxu0 0
        %1234 = vmatprep.mubr.bf16.mxu0 0
        %1235 = vmatmul.mubr.bf16.gmra.mrb[0].mxu0 %v1200
        %v1236 = vpop.f32.mrb[0].mxu0
        %v1237 = vadd.f32 0.0, %v1236
        %v1238 = vpop.f32.mrb[0].mxu0
        %v1239 = vpop.f32.mrb[0].mxu0
        %v1240 = vadd.f32 0.0, %v1239
        %v1241 = vpop.f32.mrb[0].mxu0
        %1242 = vdwg.mxu0
        %v1243 = vpack.c.bf16 %v1179, %v1178
        %v1244 = vpack.c.bf16 %v1180, %v1180
        %s1245 = scalar_lea.vmem [#allocation10], 448
        %v1246 = vld [vmem:[%s1245] sm:$0xf]
        %v1247 = vld [vmem:[%s1245 + $0x4] sm:$0xf]
        %v1248 = vld [vmem:[%s1245 + $0x8] sm:$0xf]
        %v1249 = vld [vmem:[%s1245 + $0xc] sm:$0xf]
        %1252 = vrot.lane.b32.xlu0 %v1243, 96
        %v1253 = vpop.permute.xlu0 %1252
        %1254 = vrot.lane.b32.xlu0 %v1244, 96
        %v1255 = vpop.permute.xlu0 %1254
        %v1260 = vunpack.c.l.b16 %v1246
        %v1261 = vunpack.c.l.b16 %v1247
        %v1262 = vunpack.c.l.b16 %v1248
        %v1263 = vunpack.c.l.b16 %v1249
        %v1264 = vpack.c.b16 %v1261, %v1260
        %v1265 = vpack.c.b16 %v1263, %v1262
        %v1269 = vsel %vm544, %v1253, 0
        %v1272 = vsel %vm544, %v1255, 0
        %1274 = vmatprep.subr.bf16.mxu0 0
        %1275 = vmatpush1.bf16.msra.mxu0 %v1264
        %1276 = vmatprep.subr.bf16.mxu0 0
        %1277 = vmatpush1.bf16.msra.mxu0 %v1265
        %1278 = vmatprep.subr.bf16.mxu0 0
        %1279 = vmatpush1.bf16.msra.mxu0 0
        %1280 = vmatprep.subr.bf16.mxu0 0
        %1281 = vmatpush1.bf16.msra.mxu0 0
        %1282 = vmatprep.subr.bf16.mxu0 0
        %1283 = vmatpush1.bf16.msra.mxu0 0
        %1284 = vmatprep.subr.bf16.mxu0 0
        %1285 = vmatpush1.bf16.msra.mxu0 0
        %1286 = vmatprep.subr.bf16.mxu0 0
        %1287 = vmatpush1.bf16.msra.mxu0 0
        %1288 = vmatprep.subr.bf16.mxu0 0
        %1289 = vmatpush1.bf16.msra.mxu0 0
        %1290 = vmatprep.subr.bf16.mxu0 0
        %1291 = vmatpush1.bf16.msra.mxu0 0
        %1292 = vmatprep.subr.bf16.mxu0 0
        %1293 = vmatpush1.bf16.msra.mxu0 0
        %1294 = vmatprep.subr.bf16.mxu0 0
        %1295 = vmatpush1.bf16.msra.mxu0 0
        %1296 = vmatprep.subr.bf16.mxu0 0
        %1297 = vmatpush1.bf16.msra.mxu0 0
        %1298 = vmatprep.subr.bf16.mxu0 0
        %1299 = vmatpush1.bf16.msra.mxu0 0
        %1300 = vmatprep.subr.bf16.mxu0 0
        %1301 = vmatpush1.bf16.msra.mxu0 0
        %1302 = vmatprep.subr.bf16.mxu0 0
        %1303 = vmatpush1.bf16.msra.mxu0 0
        %1304 = vmatprep.subr.bf16.mxu0 0
        %1305 = vmatpush1.bf16.msra.mxu0 0
        %1306 = vmatprep.mubr.bf16.mxu0 0
        %1307 = vmatmul.mubr.bf16.gmra.mrb[0].mxu0 %v1269
        %v1308 = vpop.f32.mrb[0].mxu0
        %v1309 = vadd.f32 0.0, %v1308
        %v1310 = vpop.f32.mrb[0].mxu0
        %v1311 = vpop.f32.mrb[0].mxu0
        %v1312 = vadd.f32 0.0, %v1311
        %v1313 = vpop.f32.mrb[0].mxu0
        %1314 = vmatprep.mubr.bf16.mxu0 0
        %1315 = vmatmul.mubr.bf16.gmra.mrb[0].mxu0 %v1272
        %v1316 = vpop.f32.mrb[0].mxu0
        %v1317 = vadd.f32 0.0, %v1316
        %v1318 = vpop.f32.mrb[0].mxu0
        %v1319 = vpop.f32.mrb[0].mxu0
        %v1320 = vpop.f32.mrb[0].mxu0
        %1321 = vdwg.mxu0
        %v1322 = vpack.c.bf16 %v1240, %v1237
        %v1323 = vpack.c.bf16 %v1312, %v1309
        %v1324 = vpack.c.bf16 %v1317, %v1317
        %v1326 = vsel %vm955, %v1324, 0
        %1328 = vmatprep.subr.bf16.mxu0 0
        %1329 = vmatpush1.bf16.msra.mxu0 %v1323
        %1330 = vmatprep.subr.bf16.mxu0 0
        %1331 = vmatpush1.bf16.msra.mxu0 %v1326
        %1332 = vmatprep.subr.bf16.mxu0 0
        %1333 = vmatpush1.bf16.msra.mxu0 0
        %1334 = vmatprep.subr.bf16.mxu0 0
        %1335 = vmatpush1.bf16.msra.mxu0 0
        %1336 = vmatprep.subr.bf16.mxu0 0
        %1337 = vmatpush1.bf16.msra.mxu0 0
        %1338 = vmatprep.subr.bf16.mxu0 0
        %1339 = vmatpush1.bf16.msra.mxu0 0
        %1340 = vmatprep.subr.bf16.mxu0 0
        %1341 = vmatpush1.bf16.msra.mxu0 0
        %1342 = vmatprep.subr.bf16.mxu0 0
        %1343 = vmatpush1.bf16.msra.mxu0 0
        %1344 = vmatprep.subr.bf16.mxu0 0
        %1345 = vmatpush1.bf16.msra.mxu0 0
        %1346 = vmatprep.subr.bf16.mxu0 0
        %1347 = vmatpush1.bf16.msra.mxu0 0
        %1348 = vmatprep.subr.bf16.mxu0 0
        %1349 = vmatpush1.bf16.msra.mxu0 0
        %1350 = vmatprep.subr.bf16.mxu0 0
        %1351 = vmatpush1.bf16.msra.mxu0 0
        %1352 = vmatprep.subr.bf16.mxu0 0
        %1353 = vmatpush1.bf16.msra.mxu0 0
        %1354 = vmatprep.subr.bf16.mxu0 0
        %1355 = vmatpush1.bf16.msra.mxu0 0
        %1356 = vmatprep.subr.bf16.mxu0 0
        %1357 = vmatpush1.bf16.msra.mxu0 0
        %1358 = vmatprep.subr.bf16.mxu0 0
        %1359 = vmatpush1.bf16.msra.mxu0 0
        %1360 = vmatprep.mubr.bf16.mxu0 0
        %1361 = vmatmul.mubr.bf16.gmra.mrb[0].mxu0 %v953
        %v1362 = vpop.f32.mrb[0].mxu0
        %v1363 = vadd.f32 0.0, %v1362
        %v1364 = vpop.f32.mrb[0].mxu0
        %v1365 = vpop.f32.mrb[0].mxu0
        %v1366 = vadd.f32 0.0, %v1365
        %v1367 = vpop.f32.mrb[0].mxu0
        %1368 = vdwg.mxu0
        %1369 = vmatprep.subr.bf16.mxu0 0
        %1370 = vmatpush1.bf16.msra.mxu0 %v1322
        %1371 = vmatprep.subr.bf16.mxu0 0
        %1372 = vmatpush1.bf16.msra.mxu0 0
        %1373 = vmatprep.subr.bf16.mxu0 0
        %1374 = vmatpush1.bf16.msra.mxu0 0
        %1375 = vmatprep.subr.bf16.mxu0 0
        %1376 = vmatpush1.bf16.msra.mxu0 0
        %1377 = vmatprep.subr.bf16.mxu0 0
        %1378 = vmatpush1.bf16.msra.mxu0 0
        %1379 = vmatprep.subr.bf16.mxu0 0
        %1380 = vmatpush1.bf16.msra.mxu0 0
        %1381 = vmatprep.subr.bf16.mxu0 0
        %1382 = vmatpush1.bf16.msra.mxu0 0
        %1383 = vmatprep.subr.bf16.mxu0 0
        %1384 = vmatpush1.bf16.msra.mxu0 0
        %1385 = vmatprep.subr.bf16.mxu0 0
        %1386 = vmatpush1.bf16.msra.mxu0 0
        %1387 = vmatprep.subr.bf16.mxu0 0
        %1388 = vmatpush1.bf16.msra.mxu0 0
        %1389 = vmatprep.subr.bf16.mxu0 0
        %1390 = vmatpush1.bf16.msra.mxu0 0
        %1391 = vmatprep.subr.bf16.mxu0 0
        %1392 = vmatpush1.bf16.msra.mxu0 0
        %1393 = vmatprep.subr.bf16.mxu0 0
        %1394 = vmatpush1.bf16.msra.mxu0 0
        %1395 = vmatprep.subr.bf16.mxu0 0
        %1396 = vmatpush1.bf16.msra.mxu0 0
        %1397 = vmatprep.subr.bf16.mxu0 0
        %1398 = vmatpush1.bf16.msra.mxu0 0
        %1399 = vmatprep.subr.bf16.mxu0 0
        %1400 = vmatpush1.bf16.msra.mxu0 0
        %1401 = vmatprep.mubr.bf16.mxu0 0
        %1402 = vmatmul.mubr.bf16.gmra.mrb[0].mxu0 %v1019
        %v1403 = vpop.f32.mrb[0].mxu0
        %v1404 = vadd.f32 0.0, %v1403
        %v1405 = vpop.f32.mrb[0].mxu0
        %v1406 = vpop.f32.mrb[0].mxu0
        %v1407 = vadd.f32 0.0, %v1406
        %v1408 = vpop.f32.mrb[0].mxu0
        %1409 = vmatprep.mubr.bf16.mxu0 0
        %1410 = vmatmul.mubr.bf16.gmra.mrb[0].mxu0 %v1022
        %v1411 = vpop.f32.mrb[0].mxu0
        %v1412 = vadd.f32 0.0, %v1411
        %v1413 = vpop.f32.mrb[0].mxu0
        %v1414 = vpop.f32.mrb[0].mxu0
        %v1415 = vpop.f32.mrb[0].mxu0
        %1416 = vdwg.mxu0
        %v1417 = vadd.f32 %v1237, %v1363
        %v1418 = vadd.f32 %v1240, %v1366
        %v1419 = vld [vmem:[%s5 + $0x6] sm:$0x1]
        %v1420 = vlaneseq
        %v1421 = vshrl.u32 %v1420, 7
        %v1422 = vsub.s32 0, %v1421
        %v1423 = vrot.slane %v1419, %v1422
        %v1424 = vadd.f32 %v1417, %v1423
        %v1425 = vadd.f32 %v1418, %v1423
        %v1426 = vadd.f32 %v1309, %v1404
        %v1427 = vadd.f32 %v1312, %v1407
        %v1428 = vadd.f32 %v1317, %v1412
        %v1429 = vld [vmem:[%s5 + $0x7] sm:$0x1]
        %v1430 = vlaneseq
        %v1431 = vshrl.u32 %v1430, 7
        %v1432 = vsub.s32 0, %v1431
        %v1433 = vrot.slane %v1429, %v1432
        %1435 = vrot.lane.b32.xlu0 %v1433, 32
        %v1436 = vpop.permute.xlu0 %1435
        %v1438 = vadd.f32 %v1426, %v1436
        %v1439 = vadd.f32 %v1427, %v1436
        %v1440 = vadd.f32 %v1428, %v1436
        %1441 = vmatprep.subr.bf16.mxu0 0
        %1442 = vmatpush1.bf16.msra.mxu0 %v1323
        %1443 = vmatprep.subr.bf16.mxu0 0
        %1444 = vmatpush1.bf16.msra.mxu0 %v1326
        %1445 = vmatprep.subr.bf16.mxu0 0
        %1446 = vmatpush1.bf16.msra.mxu0 0
        %1447 = vmatprep.subr.bf16.mxu0 0
        %1448 = vmatpush1.bf16.msra.mxu0 0
        %1449 = vmatprep.subr.bf16.mxu0 0
        %1450 = vmatpush1.bf16.msra.mxu0 0
        %1451 = vmatprep.subr.bf16.mxu0 0
        %1452 = vmatpush1.bf16.msra.mxu0 0
        %1453 = vmatprep.subr.bf16.mxu0 0
        %1454 = vmatpush1.bf16.msra.mxu0 0
        %1455 = vmatprep.subr.bf16.mxu0 0
        %1456 = vmatpush1.bf16.msra.mxu0 0
        %1457 = vmatprep.subr.bf16.mxu0 0
        %1458 = vmatpush1.bf16.msra.mxu0 0
        %1459 = vmatprep.subr.bf16.mxu0 0
        %1460 = vmatpush1.bf16.msra.mxu0 0
        %1461 = vmatprep.subr.bf16.mxu0 0
        %1462 = vmatpush1.bf16.msra.mxu0 0
        %1463 = vmatprep.subr.bf16.mxu0 0
        %1464 = vmatpush1.bf16.msra.mxu0 0
        %1465 = vmatprep.subr.bf16.mxu0 0
        %1466 = vmatpush1.bf16.msra.mxu0 0
        %1467 = vmatprep.subr.bf16.mxu0 0
        %1468 = vmatpush1.bf16.msra.mxu0 0
        %1469 = vmatprep.subr.bf16.mxu0 0
        %1470 = vmatpush1.bf16.msra.mxu0 0
        %1471 = vmatprep.subr.bf16.mxu0 0
        %1472 = vmatpush1.bf16.msra.mxu0 0
        %1473 = vmatprep.mubr.bf16.mxu0 0
        %1474 = vmatmul.mubr.bf16.gmra.mrb[0].mxu0 %v1108
        %v1475 = vpop.f32.mrb[0].mxu0
        %v1476 = vadd.f32 0.0, %v1475
        %v1477 = vpop.f32.mrb[0].mxu0
        %v1478 = vpop.f32.mrb[0].mxu0
        %v1479 = vadd.f32 0.0, %v1478
        %v1480 = vpop.f32.mrb[0].mxu0
        %1481 = vmatprep.mubr.bf16.mxu0 0
        %1482 = vmatmul.mubr.bf16.gmra.mrb[0].mxu0 %v1111
        %v1483 = vpop.f32.mrb[0].mxu0
        %v1484 = vadd.f32 0.0, %v1483
        %v1485 = vpop.f32.mrb[0].mxu0
        %v1486 = vpop.f32.mrb[0].mxu0
        %v1487 = vpop.f32.mrb[0].mxu0
        %1488 = vdwg.mxu0
        %1492 = vrot.lane.b32.xlu0 %v1476, 96
        %v1493 = vpop.permute.xlu0 %1492
        %1494 = vrot.lane.b32.xlu0 %v1479, 96
        %v1495 = vpop.permute.xlu0 %1494
        %1496 = vrot.lane.b32.xlu0 %v1484, 96
        %v1497 = vpop.permute.xlu0 %1496
        %v1501 = vadd.f32 %v1438, %v1493
        %v1502 = vadd.f32 %v1439, %v1495
        %v1503 = vadd.f32 %v1440, %v1497
        %v1504 = vmax.f32 %v1424, 0.0
        %v1505 = vmax.f32 %v1425, 0.0
        %v1506 = vmax.f32 %v1501, 0.0
        %v1507 = vmax.f32 %v1502, 0.0
        %v1508 = vmax.f32 %v1503, 0.0
        %v1509 = vsel %vm544, %v1504, 0.0
        %v1510 = vsel %vm544, %v1505, 0.0
        %v1511 = vadd.f32 %v1509, %v1510
        %v1512 = vrot.slane %v1511, 4
        %v1513 = vadd.f32 %v1511, %v1512
        %v1514 = vrot.slane %v1513, 2
        %v1515 = vadd.f32 %v1513, %v1514
        %v1516 = vrot.slane %v1515, 1
        %v1517 = vadd.f32 %v1515, %v1516
        %v1518 = vrcp.pop 16.0
        %v1519 = vmul.f32 %v1517, %v1518
        %vm1520 = vcmask 523520
        %v1521 = vsel %vm1520, %v1506, 0.0
        %v1522 = vsel %vm1520, %v1507, 0.0
        %v1523 = vadd.f32 %v1521, %v1522
        %v1524 = vsel %vm1520, %v1508, 0.0
        %v1525 = vadd.f32 %v1523, %v1524
        %v1526 = vrot.slane %v1525, 4
        %v1527 = vadd.f32 %v1525, %v1526
        %v1528 = vrot.slane %v1527, 2
        %v1529 = vadd.f32 %v1527, %v1528
        %v1530 = vrot.slane %v1529, 1
        %v1531 = vadd.f32 %v1529, %v1530
        %v1532 = vrcp.pop 24.0
        %v1533 = vmul.f32 %v1531, %v1532
        %v1534 = vpack.c.bf16 %v1519, %v1519
        %s1535 = scalar_lea.vmem [#allocation10], 512
        %v1536 = vld [vmem:[%s1535] sm:$0xf]
        %v1537 = vld [vmem:[%s1535 + $0x4] sm:$0xf]
        %v1538 = vld [vmem:[%s1535 + $0x8] sm:$0xf]
        %v1539 = vld [vmem:[%s1535 + $0xc] sm:$0xf]
        %v1540 = vpack.c.bf16 %v1533, %v1533
        %s1541 = scalar_lea.vmem [#allocation10], 576
        %v1542 = vld [vmem:[%s1541] sm:$0xf]
        %v1543 = vld [vmem:[%s1541 + $0x4] sm:$0xf]
        %v1544 = vld [vmem:[%s1541 + $0x8] sm:$0xf]
        %v1545 = vld [vmem:[%s1541 + $0xc] sm:$0xf]
        %1547 = vrot.lane.b32.xlu0 %v1540, 96
        %v1548 = vpop.permute.xlu0 %1547
        %v1553 = vunpack.c.l.b16 %v1542
        %v1554 = vunpack.c.l.b16 %v1543
        %v1555 = vunpack.c.l.b16 %v1544
        %v1556 = vunpack.c.l.b16 %v1545
        %v1557 = vpack.c.b16 %v1554, %v1553
        %v1558 = vpack.c.b16 %v1556, %v1555
        %v1562 = vsel %vm544, %v1548, 0
        %1564 = vmatprep.subr.bf16.mxu0 0
        %1565 = vmatpush1.bf16.msra.mxu0 %v1557
        %1566 = vmatprep.subr.bf16.mxu0 0
        %1567 = vmatpush1.bf16.msra.mxu0 %v1558
        %1568 = vmatprep.subr.bf16.mxu0 0
        %1569 = vmatpush1.bf16.msra.mxu0 0
        %1570 = vmatprep.subr.bf16.mxu0 0
        %1571 = vmatpush1.bf16.msra.mxu0 0
        %1572 = vmatprep.subr.bf16.mxu0 0
        %1573 = vmatpush1.bf16.msra.mxu0 0
        %1574 = vmatprep.subr.bf16.mxu0 0
        %1575 = vmatpush1.bf16.msra.mxu0 0
        %1576 = vmatprep.subr.bf16.mxu0 0
        %1577 = vmatpush1.bf16.msra.mxu0 0
        %1578 = vmatprep.subr.bf16.mxu0 0
        %1579 = vmatpush1.bf16.msra.mxu0 0
        %1580 = vmatprep.subr.bf16.mxu0 0
        %1581 = vmatpush1.bf16.msra.mxu0 0
        %1582 = vmatprep.subr.bf16.mxu0 0
        %1583 = vmatpush1.bf16.msra.mxu0 0
        %1584 = vmatprep.subr.bf16.mxu0 0
        %1585 = vmatpush1.bf16.msra.mxu0 0
        %1586 = vmatprep.subr.bf16.mxu0 0
        %1587 = vmatpush1.bf16.msra.mxu0 0
        %1588 = vmatprep.subr.bf16.mxu0 0
        %1589 = vmatpush1.bf16.msra.mxu0 0
        %1590 = vmatprep.subr.bf16.mxu0 0
        %1591 = vmatpush1.bf16.msra.mxu0 0
        %1592 = vmatprep.subr.bf16.mxu0 0
        %1593 = vmatpush1.bf16.msra.mxu0 0
        %1594 = vmatprep.subr.bf16.mxu0 0
        %1595 = vmatpush1.bf16.msra.mxu0 0
        %1596 = vmatprep.mubr.bf16.mxu0 0
        %1597 = vmatmul.mubr.bf16.gmra.mrb[0].mxu0 %v1562
        %v1598 = vpop.f32.mrb[0].mxu0
        %v1599 = vadd.f32 0.0, %v1598
        %v1600 = vpop.f32.mrb[0].mxu0
        %v1601 = vpop.f32.mrb[0].mxu0
        %v1602 = vpop.f32.mrb[0].mxu0
        %1603 = vdwg.mxu0
        %v1608 = vunpack.c.l.b16 %v1536
        %v1609 = vunpack.c.l.b16 %v1537
        %v1610 = vunpack.c.l.b16 %v1538
        %v1611 = vunpack.c.l.b16 %v1539
        %v1612 = vpack.c.b16 %v1609, %v1608
        %v1613 = vpack.c.b16 %v1611, %v1610
        %v1617 = vsel %vm544, %v1534, 0
        %1619 = vmatprep.subr.bf16.mxu0 0
        %1620 = vmatpush1.bf16.msra.mxu0 %v1612
        %1621 = vmatprep.subr.bf16.mxu0 0
        %1622 = vmatpush1.bf16.msra.mxu0 %v1613
        %1623 = vmatprep.subr.bf16.mxu0 0
        %1624 = vmatpush1.bf16.msra.mxu0 0
        %1625 = vmatprep.subr.bf16.mxu0 0
        %1626 = vmatpush1.bf16.msra.mxu0 0
        %1627 = vmatprep.subr.bf16.mxu0 0
        %1628 = vmatpush1.bf16.msra.mxu0 0
        %1629 = vmatprep.subr.bf16.mxu0 0
        %1630 = vmatpush1.bf16.msra.mxu0 0
        %1631 = vmatprep.subr.bf16.mxu0 0
        %1632 = vmatpush1.bf16.msra.mxu0 0
        %1633 = vmatprep.subr.bf16.mxu0 0
        %1634 = vmatpush1.bf16.msra.mxu0 0
        %1635 = vmatprep.subr.bf16.mxu0 0
        %1636 = vmatpush1.bf16.msra.mxu0 0
        %1637 = vmatprep.subr.bf16.mxu0 0
        %1638 = vmatpush1.bf16.msra.mxu0 0
        %1639 = vmatprep.subr.bf16.mxu0 0
        %1640 = vmatpush1.bf16.msra.mxu0 0
        %1641 = vmatprep.subr.bf16.mxu0 0
        %1642 = vmatpush1.bf16.msra.mxu0 0
        %1643 = vmatprep.subr.bf16.mxu0 0
        %1644 = vmatpush1.bf16.msra.mxu0 0
        %1645 = vmatprep.subr.bf16.mxu0 0
        %1646 = vmatpush1.bf16.msra.mxu0 0
        %1647 = vmatprep.subr.bf16.mxu0 0
        %1648 = vmatpush1.bf16.msra.mxu0 0
        %1649 = vmatprep.subr.bf16.mxu0 0
        %1650 = vmatpush1.bf16.msra.mxu0 0
        %1651 = vmatprep.mubr.bf16.mxu0 0
        %1652 = vmatmul.mubr.bf16.gmra.mrb[0].mxu0 %v1617
        %v1653 = vpop.f32.mrb[0].mxu0
        %v1654 = vadd.f32 %v1599, %v1653
        %v1655 = vpop.f32.mrb[0].mxu0
        %v1656 = vpop.f32.mrb[0].mxu0
        %v1657 = vpop.f32.mrb[0].mxu0
        %1658 = vdwg.mxu0
        %v1659 = vld [vmem:[%s5 + $0x8] sm:$0x1]
        %v1660 = vadd.f32 %v1654, %v1659
        %v1661 = vmax.f32 %v1660, 0.0
        %v1662 = vpack.c.bf16 %v1661, %v1661
        %s1663 = scalar_lea.vmem [#allocation10], 640
        %v1664 = vld [vmem:[%s1663] sm:$0xf]
        %v1665 = vld [vmem:[%s1663 + $0x4] sm:$0xf]
        %v1666 = vld [vmem:[%s1663 + $0x8] sm:$0xf]
        %v1667 = vld [vmem:[%s1663 + $0xc] sm:$0xf]
        %v1668 = vld [vmem:[%s5 + $0x9] sm:$0x1]
        %v1673 = vunpack.c.l.b16 %v1664
        %v1674 = vunpack.c.l.b16 %v1665
        %v1675 = vunpack.c.l.b16 %v1666
        %v1676 = vunpack.c.l.b16 %v1667
        %v1677 = vpack.c.b16 %v1674, %v1673
        %v1678 = vpack.c.b16 %v1676, %v1675
        %v1682 = vsel %vm544, %v1662, 0
        %1684 = vmatprep.subr.bf16.mxu0 0
        %1685 = vmatpush1.bf16.msra.mxu0 %v1677
        %1686 = vmatprep.subr.bf16.mxu0 0
        %1687 = vmatpush1.bf16.msra.mxu0 %v1678
        %1688 = vmatprep.subr.bf16.mxu0 0
        %1689 = vmatpush1.bf16.msra.mxu0 0
        %1690 = vmatprep.subr.bf16.mxu0 0
        %1691 = vmatpush1.bf16.msra.mxu0 0
        %1692 = vmatprep.subr.bf16.mxu0 0
        %1693 = vmatpush1.bf16.msra.mxu0 0
        %1694 = vmatprep.subr.bf16.mxu0 0
        %1695 = vmatpush1.bf16.msra.mxu0 0
        %1696 = vmatprep.subr.bf16.mxu0 0
        %1697 = vmatpush1.bf16.msra.mxu0 0
        %1698 = vmatprep.subr.bf16.mxu0 0
        %1699 = vmatpush1.bf16.msra.mxu0 0
        %1700 = vmatprep.subr.bf16.mxu0 0
        %1701 = vmatpush1.bf16.msra.mxu0 0
        %1702 = vmatprep.subr.bf16.mxu0 0
        %1703 = vmatpush1.bf16.msra.mxu0 0
        %1704 = vmatprep.subr.bf16.mxu0 0
        %1705 = vmatpush1.bf16.msra.mxu0 0
        %1706 = vmatprep.subr.bf16.mxu0 0
        %1707 = vmatpush1.bf16.msra.mxu0 0
        %1708 = vmatprep.subr.bf16.mxu0 0
        %1709 = vmatpush1.bf16.msra.mxu0 0
        %1710 = vmatprep.subr.bf16.mxu0 0
        %1711 = vmatpush1.bf16.msra.mxu0 0
        %1712 = vmatprep.subr.bf16.mxu0 0
        %1713 = vmatpush1.bf16.msra.mxu0 0
        %1714 = vmatprep.subr.bf16.mxu0 0
        %1715 = vmatpush1.bf16.msra.mxu0 0
        %1716 = vmatprep.mubr.bf16.mxu0 0
        %1717 = vmatmul.mubr.bf16.gmra.mrb[0].mxu0 %v1682
        %v1718 = vpop.f32.mrb[0].mxu0
        %v1719 = vadd.f32 %v1668, %v1718
        %v1720 = vpop.f32.mrb[0].mxu0
        %v1721 = vpop.f32.mrb[0].mxu0
        %v1722 = vpop.f32.mrb[0].mxu0
        %1723 = vdwg.mxu0
        %v1724 = vmax.f32 %v1719, 0.0
        %v1725 = vpack.c.bf16 %v1724, %v1724
        %s1726 = scalar_lea.vmem [#allocation10], 704
        %v1727 = vld [vmem:[%s1726] sm:$0xf]
        %v1728 = vld [vmem:[%s1726 + $0x4] sm:$0xf]
        %v1729 = vld [vmem:[%s1726 + $0x8] sm:$0xf]
        %v1730 = vld [vmem:[%s1726 + $0xc] sm:$0xf]
        %v1731 = vld [vmem:[%s5 + $0xa] sm:$0x1]
        %v1736 = vunpack.c.l.b16 %v1727
        %v1737 = vunpack.c.l.b16 %v1728
        %v1738 = vunpack.c.l.b16 %v1729
        %v1739 = vunpack.c.l.b16 %v1730
        %v1740 = vpack.c.b16 %v1737, %v1736
        %v1741 = vpack.c.b16 %v1739, %v1738
        %v1745 = vsel %vm544, %v1725, 0
        %1747 = vmatprep.subr.bf16.mxu0 0
        %1748 = vmatpush1.bf16.msra.mxu0 %v1740
        %1749 = vmatprep.subr.bf16.mxu0 0
        %1750 = vmatpush1.bf16.msra.mxu0 %v1741
        %1751 = vmatprep.subr.bf16.mxu0 0
        %1752 = vmatpush1.bf16.msra.mxu0 0
        %1753 = vmatprep.subr.bf16.mxu0 0
        %1754 = vmatpush1.bf16.msra.mxu0 0
        %1755 = vmatprep.subr.bf16.mxu0 0
        %1756 = vmatpush1.bf16.msra.mxu0 0
        %1757 = vmatprep.subr.bf16.mxu0 0
        %1758 = vmatpush1.bf16.msra.mxu0 0
        %1759 = vmatprep.subr.bf16.mxu0 0
        %1760 = vmatpush1.bf16.msra.mxu0 0
        %1761 = vmatprep.subr.bf16.mxu0 0
        %1762 = vmatpush1.bf16.msra.mxu0 0
        %1763 = vmatprep.subr.bf16.mxu0 0
        %1764 = vmatpush1.bf16.msra.mxu0 0
        %1765 = vmatprep.subr.bf16.mxu0 0
        %1766 = vmatpush1.bf16.msra.mxu0 0
        %1767 = vmatprep.subr.bf16.mxu0 0
        %1768 = vmatpush1.bf16.msra.mxu0 0
        %1769 = vmatprep.subr.bf16.mxu0 0
        %1770 = vmatpush1.bf16.msra.mxu0 0
        %1771 = vmatprep.subr.bf16.mxu0 0
        %1772 = vmatpush1.bf16.msra.mxu0 0
        %1773 = vmatprep.subr.bf16.mxu0 0
        %1774 = vmatpush1.bf16.msra.mxu0 0
        %1775 = vmatprep.subr.bf16.mxu0 0
        %1776 = vmatpush1.bf16.msra.mxu0 0
        %1777 = vmatprep.subr.bf16.mxu0 0
        %1778 = vmatpush1.bf16.msra.mxu0 0
        %1779 = vmatprep.mubr.bf16.mxu0 0
        %1780 = vmatmul.mubr.bf16.gmra.mrb[0].mxu0 %v1745
        %v1781 = vpop.f32.mrb[0].mxu0
        %v1782 = vadd.f32 %v1731, %v1781
        %v1783 = vpop.f32.mrb[0].mxu0
        %v1784 = vpop.f32.mrb[0].mxu0
        %v1785 = vpop.f32.mrb[0].mxu0
        %1786 = vdwg.mxu0
        %v1787 = vmax.f32 %v1782, 0.0
        %v1788 = vpack.c.bf16 %v1787, %v1787
        %s1789 = scalar_lea.vmem [#allocation10], 768
        %v1790 = vld [vmem:[%s1789] sm:$0xf]
        %v1791 = vld [vmem:[%s1789 + $0x4] sm:$0xf]
        %v1792 = vld [vmem:[%s1789 + $0x8] sm:$0xf]
        %v1793 = vld [vmem:[%s1789 + $0xc] sm:$0xf]
        %v1794 = vld [vmem:[%s5 + $0xb] sm:$0x1]
        %v1799 = vunpack.c.l.b16 %v1790
        %v1800 = vunpack.c.l.b16 %v1791
        %v1801 = vunpack.c.l.b16 %v1792
        %v1802 = vunpack.c.l.b16 %v1793
        %v1803 = vpack.c.b16 %v1800, %v1799
        %v1804 = vpack.c.b16 %v1802, %v1801
        %v1808 = vsel %vm544, %v1788, 0
        %1810 = vmatprep.subr.bf16.mxu0 0
        %1811 = vmatpush1.bf16.msra.mxu0 %v1803
        %1812 = vmatprep.subr.bf16.mxu0 0
        %1813 = vmatpush1.bf16.msra.mxu0 %v1804
        %1814 = vmatprep.subr.bf16.mxu0 0
        %1815 = vmatpush1.bf16.msra.mxu0 0
        %1816 = vmatprep.subr.bf16.mxu0 0
        %1817 = vmatpush1.bf16.msra.mxu0 0
        %1818 = vmatprep.subr.bf16.mxu0 0
        %1819 = vmatpush1.bf16.msra.mxu0 0
        %1820 = vmatprep.subr.bf16.mxu0 0
        %1821 = vmatpush1.bf16.msra.mxu0 0
        %1822 = vmatprep.subr.bf16.mxu0 0
        %1823 = vmatpush1.bf16.msra.mxu0 0
        %1824 = vmatprep.subr.bf16.mxu0 0
        %1825 = vmatpush1.bf16.msra.mxu0 0
        %1826 = vmatprep.subr.bf16.mxu0 0
        %1827 = vmatpush1.bf16.msra.mxu0 0
        %1828 = vmatprep.subr.bf16.mxu0 0
        %1829 = vmatpush1.bf16.msra.mxu0 0
        %1830 = vmatprep.subr.bf16.mxu0 0
        %1831 = vmatpush1.bf16.msra.mxu0 0
        %1832 = vmatprep.subr.bf16.mxu0 0
        %1833 = vmatpush1.bf16.msra.mxu0 0
        %1834 = vmatprep.subr.bf16.mxu0 0
        %1835 = vmatpush1.bf16.msra.mxu0 0
        %1836 = vmatprep.subr.bf16.mxu0 0
        %1837 = vmatpush1.bf16.msra.mxu0 0
        %1838 = vmatprep.subr.bf16.mxu0 0
        %1839 = vmatpush1.bf16.msra.mxu0 0
        %1840 = vmatprep.subr.bf16.mxu0 0
        %1841 = vmatpush1.bf16.msra.mxu0 0
        %1842 = vmatprep.mubr.bf16.mxu0 0
        %1843 = vmatmul.mubr.bf16.gmra.mrb[0].mxu0 %v1808
        %v1844 = vpop.f32.mrb[0].mxu0
        %v1845 = vadd.f32 %v1794, %v1844
        %v1846 = vpop.f32.mrb[0].mxu0
        %v1847 = vpop.f32.mrb[0].mxu0
        %v1848 = vpop.f32.mrb[0].mxu0
        %1849 = vdwg.mxu0
        %1850 = vst [vmem:[%s399] sm:$0x1] %v1845
        %s1851 = sand.u32 %s183, 1
        %s1852 = scalar_lea.sflag [#allocation4], %s1851
        %s1853 = sand.u32 %s183, 1
        %s1854 = scalar_lea.vmem [#allocation11], %s1853
        // Predicated region
        $region65: #{tpu_custom_call.1} parent=43 // pred_check
          %p1855 = pneg %p193
        $region66: #{tpu_custom_call.1} parent=43 // pred_check_branch
          %1857 = sbr.rel (%p1855) target = $region68
        $region67: #{tpu_custom_call.1} parent=43 // pred_region
          %s1859 = ssub.s32 16, 16
          %1860 = vsyncadd %s1852, %s1859
          %s1861 = smul.addr %s29, 16
          %s1862 = scalar_lea.hbm %s6, %s1861
          %s1864 = sshll.u32 %s1854, 4
          %s1865 = int_to_ptr.vmem [resolvable:$true] %s1864
          %1867 = dma.vmem_to_hbm [thread:$0]  %s1865, 16, %s1862, %s1852
        $region68: #{tpu_custom_call.1} parent=43 // pred_fallthru
          _
      $region44: #{tpu_custom_call.1} parent=5 // pred_fallthru
        _
      %p1868 = scmp.le.s32.totalorder 2, %s24
      // Predicated region
      $region69: #{tpu_custom_call.1} parent=5 // pred_check
        %p1869 = pneg %p1868
      $region70: #{tpu_custom_call.1} parent=5 // pred_check_branch
        %1871 = sbr.rel (%p1869) target = $region72
      $region71: #{tpu_custom_call.1} parent=5 // pred_region
        %s1872 = ssub.s32 %s24, 2
        // Predicated region
        $region73: #{tpu_custom_call.1} parent=71 // pred_check
          %p1873 = pneg %p199
        $region74: #{tpu_custom_call.1} parent=71 // pred_check_branch
          %1875 = sbr.rel (%p1873) target = $region76
        $region75: #{tpu_custom_call.1} parent=71 // pred_region
          %s1876 = sand.u32 %s184, 1
          %s1877 = scalar_lea.sflag [#allocation4], %s1876
          %s1878 = sand.u32 %s184, 1
          %s1879 = scalar_lea.vmem [#allocation11], %s1878
          %1880 = dma.done %s1877, 16
        $region76: #{tpu_custom_call.1} parent=71 // pred_fallthru
          _
      $region72: #{tpu_custom_call.1} parent=5 // pred_fallthru
        _
    $region6: #{tpu_custom_call.1} parent=1 // loop_footer
      %s28 = sadd.s32 1, %s24
    $region7: #{tpu_custom_call.1} parent=1 // loop_footer_branch
      %23 = sbr.rel target = $region3
    $region8: #{tpu_custom_call.1} parent=1 // loop_exit
      _
    %1881 = vsyncpa [#allocation3], 1
    %s1882 = scalar_lea.sflag [#allocation3], 1
    %1883 = vsyncpa %s1882, 1
    %1884 = vsyncpa [#allocation6], 1
    %s1885 = scalar_lea.sflag [#allocation6], 1
    %1886 = vsyncpa %s1885, 1
    %1887 = vsyncpa [#allocation9], 1
    %s1888 = scalar_lea.sflag [#allocation9], 1
    %1889 = vsyncpa %s1888, 1
    %1890 = vsyncpa [#allocation4], 1
    %s1891 = scalar_lea.sflag [#allocation4], 1
    %1892 = vsyncpa %s1891, 1

</llo_original>
